<compile_context>
chip_gen: v7x
topology: tpu7x:2x2x1
jax: 0.10.0
libtpu: 0.0.40
codegen_flags: <defaults>
</compile_context>

<pallas_src>
from functools import partial

import jax
import jax.numpy as jnp
from jax import lax
from jax.experimental import pallas as pl
from jax.experimental.pallas import tpu as pltpu

LOSS_WEIGHT = 20.0


def _em_rec_loss_kernel(seg_ref, m_ref, mv_ref, rec_ref, tgt_ref, attn_ref,
                        out_ref, *, tb, n_slots, n_buffer, hw_true):
    S, K = n_slots, n_buffer
    inv_hw = 1.0 / float(hw_true)
    contract_hw = (((1,), (1,)), ((), ()))        # (S,HW) x (K,HW) -> (S,K)

    # ---- full-tile elementwise phase (TB*K / TB*S rows -> full 8 sublanes) ----
    seg = seg_ref[0].astype(jnp.float32)          # (TB*K, HWp)
    # log clamped at -100, matching torch.nn.functional.binary_cross_entropy.
    nls = -jnp.maximum(jnp.log(seg), -100.0)      # -log(p)
    nl1 = -jnp.maximum(jnp.log(1.0 - seg), -100.0)  # -log(1-p)

    m = (m_ref[0] > 0.5).astype(jnp.float32)      # (TB*S, HWp)
    om = 1.0 - m
    mv = (mv_ref[0] > 0.5).astype(jnp.float32)    # (TB*S, HWp)
    attn = attn_ref[0].astype(jnp.float32)        # (TB, S, K)

    acc = jnp.zeros((1, 1), jnp.float32)
    # Independent small matmuls issued back-to-back (static unroll over TB).
    for t in range(tb):
        m_t = m[t * S:(t + 1) * S, :]
        om_t = om[t * S:(t + 1) * S, :]
        mv_t = mv[t * S:(t + 1) * S, :]
        nls_t = nls[t * K:(t + 1) * K, :]
        nl1_t = nl1[t * K:(t + 1) * K, :]

        # sum_hw BCE(seg[k], m[s]) = m @ (-log p)^T + (1-m) @ (-log(1-p))^T
        bce_t = (lax.dot_general(m_t, nls_t, contract_hw,
                                 preferred_element_type=jnp.float32) +
                 lax.dot_general(om_t, nl1_t, contract_hw,
                                 preferred_element_type=jnp.float32))    # (S,K)

        # masked MSE: sum_{c,hw} mv[s,hw]*(rec[k,c,hw]-tgt[c,hw])^2
        fsum = None
        for c in range(3):                        # channel-major: leading index
            rc = rec_ref[0, c, t * K:(t + 1) * K, :].astype(jnp.float32)  # (K,HWp)
            tc = tgt_ref[0, c, t:t + 1, :].astype(jnp.float32)            # (1,HWp)
            dif = rc - tc
            fsum = dif * dif if fsum is None else fsum + dif * dif
        mse_t = lax.dot_general(mv_t, fsum, contract_hw,
                                preferred_element_type=jnp.float32)       # (S,K)

        loss_t = bce_t * inv_hw + 0.1 * mse_t
        acc = acc + jnp.sum(attn[t] * loss_t)

    out_ref[0] = acc                              # per-tile partial sum


def em_rec_loss(segmentations, masks, reconstructions, rec_tgt, masks_vis,
                attn_index, slots=None, pred_slots=None,
                loss_weight=LOSS_WEIGHT):
    """segmentations: (b,f,n_buffer,h,w), masks/masks_vis: (b,f,n_slots,h,w),
       reconstructions: (b,f,n_buffer,3,h,w), rec_tgt: (b,f,3,h,w),
       attn_index: (b,f,n_slots,n_buffer)."""
    b, f, n_buffer, h, w = segmentations.shape
    _, _, n_slots, nb2 = attn_index.shape
    assert nb2 == n_buffer
    B = b * f
    HW = h * w
    S, K = n_slots, n_buffer

    # ---- flatten spatial dims; keep native dtypes (cast happens in-kernel) ----
    seg = segmentations.reshape(B, K, HW)
    msk = masks.reshape(B, S, HW)
    mvis = masks_vis.reshape(B, S, HW)
    rec = reconstructions.reshape(B, K, 3, HW)
    tgt = rec_tgt.reshape(B, 3, HW)
    attn = attn_index.reshape(B, S, K)

    # ---- pad HW to a lane multiple (zero padding is exact for this loss) ----
    HWp = ((HW + 127) // 128) * 128
    if HWp != HW:
        p = HWp - HW
        seg = jnp.pad(seg, ((0, 0), (0, 0), (0, p)))
        msk = jnp.pad(msk, ((0, 0), (0, 0), (0, p)))
        mvis = jnp.pad(mvis, ((0, 0), (0, 0), (0, p)))
        rec = jnp.pad(rec, ((0, 0), (0, 0), (0, 0), (0, p)))
        tgt = jnp.pad(tgt, ((0, 0), (0, 0), (0, p)))

    # ---- choose TB from a VMEM budget; pad B to a multiple of TB ----
    per_batch_bytes = HWp * (K * seg.dtype.itemsize
                             + S * msk.dtype.itemsize
                             + S * mvis.dtype.itemsize
                             + 3 * K * rec.dtype.itemsize
                             + 3 * tgt.dtype.itemsize) + S * K * attn.dtype.itemsize
    budget = 6 * 1024 * 1024          # per-step blocks (x2 buffers << 32 MiB scoped)
    tb = max(1, min(budget // per_batch_bytes, 16, B))
    if tb >= 2:
        tb -= tb % 2                  # even TB -> TB*S / TB*K fill 8 sublanes
    n_tiles = pl.cdiv(B, tb)
    Bp = n_tiles * tb
    if Bp != B:
        pb = Bp - B
        seg = jnp.pad(seg, ((0, pb), (0, 0), (0, 0)))
        msk = jnp.pad(msk, ((0, pb), (0, 0), (0, 0)))
        mvis = jnp.pad(mvis, ((0, pb), (0, 0), (0, 0)))
        rec = jnp.pad(rec, ((0, pb), (0, 0), (0, 0), (0, 0)))
        tgt = jnp.pad(tgt, ((0, pb), (0, 0), (0, 0)))
        attn = jnp.pad(attn, ((0, pb), (0, 0), (0, 0)))

    # ---- layout: tile-major batches, channel-major rec/tgt, merged sublanes ----
    seg_t = seg.reshape(n_tiles, tb * K, HWp)
    msk_t = msk.reshape(n_tiles, tb * S, HWp)
    mvis_t = mvis.reshape(n_tiles, tb * S, HWp)
    rec_t = (rec.reshape(n_tiles, tb, K, 3, HWp)
                .transpose(0, 3, 1, 2, 4)
                .reshape(n_tiles, 3, tb * K, HWp))
    tgt_t = tgt.reshape(n_tiles, tb, 3, HWp).transpose(0, 2, 1, 3)  # (nt,3,tb,HWp)
    attn_t = attn.reshape(n_tiles, tb, S, K)

    kernel = partial(_em_rec_loss_kernel, tb=tb, n_slots=S, n_buffer=K,
                     hw_true=HW)

    bytes_accessed = (seg_t.nbytes + msk_t.nbytes + mvis_t.nbytes + rec_t.nbytes
                      + tgt_t.nbytes + attn_t.nbytes + n_tiles * 4)
    cost = pl.CostEstimate(
        flops=int(Bp * (6 * S * K * HWp + 12 * K * HWp + 6 * S * HWp)),
        transcendentals=int(2 * Bp * K * HWp),
        bytes_accessed=int(bytes_accessed))

    partials = pl.pallas_call(
        kernel,
        out_shape=jax.ShapeDtypeStruct((n_tiles, 1, 1), jnp.float32),
        grid=(n_tiles,),
        in_specs=[
            pl.BlockSpec((1, tb * K, HWp), lambda i: (i, 0, 0)),
            pl.BlockSpec((1, tb * S, HWp), lambda i: (i, 0, 0)),
            pl.BlockSpec((1, tb * S, HWp), lambda i: (i, 0, 0)),
            pl.BlockSpec((1, 3, tb * K, HWp), lambda i: (i, 0, 0, 0)),
            pl.BlockSpec((1, 3, tb, HWp), lambda i: (i, 0, 0, 0)),
            pl.BlockSpec((1, tb, S, K), lambda i: (i, 0, 0, 0)),
        ],
        out_specs=pl.BlockSpec((1, 1, 1), lambda i: (i, 0, 0)),
        compiler_params=pltpu.CompilerParams(
            dimension_semantics=("parallel",),
            vmem_limit_bytes=32 * 1024 * 1024),
        cost_estimate=cost,
    )(seg_t, msk_t, mvis_t, rec_t, tgt_t, attn_t)

    total = jnp.sum(partials) / float(B * S * K)
    return total * loss_weight


def em_rec_loss_ref(segmentations, masks, reconstructions, rec_tgt, masks_vis,
                    attn_index, loss_weight=LOSS_WEIGHT):
    """Pure-JAX reference mirroring the PyTorch forward exactly."""
    b, f, n_buffer, h, w = segmentations.shape
    _, _, n_slots, _ = attn_index.shape
    B = b * f
    seg = segmentations.reshape(B, 1, n_buffer, h, w).astype(jnp.float32)
    m = (masks.reshape(B, n_slots, 1, h, w) > 0.5).astype(jnp.float32)
    mv = (masks_vis.reshape(B, n_slots, 1, 1, h, w) > 0.5).astype(jnp.float32)
    rec = reconstructions.reshape(B, 1, n_buffer, 3, h, w).astype(jnp.float32)
    tgt = rec_tgt.reshape(B, 1, 1, 3, h, w).astype(jnp.float32)
    attn = attn_index.reshape(B, n_slots, n_buffer).astype(jnp.float32)

    log_s = jnp.maximum(jnp.log(seg), -100.0)
    log_1ms = jnp.maximum(jnp.log(1.0 - seg), -100.0)
    bce = -(m * log_s + (1.0 - m) * log_1ms)                  # (B,S,K,h,w)
    rec_pred = rec * mv
    rec_tgt_ = tgt * mv
    mse = (rec_pred - rec_tgt_) ** 2                           # (B,S,K,3,h,w)
    loss = bce.sum((-1, -2)) / (h * w) + 0.1 * mse.sum((-3, -2, -1))
    total = (attn * loss).sum() / (B * n_slots * n_buffer)
    return total * loss_weight


if __name__ == "__main__":
    key = jax.random.PRNGKey(0)
    b, f, n_slots, n_buffer, h, w = 2, 2, 4, 4, 16, 16

    k1, k2, k3, k4, k5, k6 = jax.random.split(key, 6)
    segmentations = jax.random.uniform(
        k1, (b, f, n_buffer, h, w), minval=0.02, maxval=0.98, dtype=jnp.float32)
    masks = jax.random.uniform(k2, (b, f, n_slots, h, w), dtype=jnp.float32)
    masks_vis = jax.random.uniform(k3, (b, f, n_slots, h, w), dtype=jnp.float32)
    reconstructions = jax.random.normal(
        k4, (b, f, n_buffer, 3, h, w), dtype=jnp.float32)
    rec_tgt = jax.random.normal(k5, (b, f, 3, h, w), dtype=jnp.float32)
    attn_index = jax.nn.softmax(
        jax.random.normal(k6, (b, f, n_slots, n_buffer), dtype=jnp.float32),
        axis=-1)

    out = em_rec_loss(segmentations, masks, reconstructions, rec_tgt,
                      masks_vis, attn_index)
    out = jax.block_until_ready(out)

    ref = em_rec_loss_ref(segmentations, masks, reconstructions, rec_tgt,
                          masks_vis, attn_index)
    assert jnp.allclose(out, ref, rtol=1e-3, atol=1e-4), (out, ref)
    print("KERNEL_OK")
</pallas_src>

<mosaic_0001>
module attributes {stable_mosaic.version = 11 : i64} {
  func.func @_em_rec_loss_kernel(%arg0: i32, %arg1: memref<1x16x256xf32, #tpu.memory_space<vmem>>, %arg2: memref<1x16x256xf32, #tpu.memory_space<vmem>>, %arg3: memref<1x16x256xf32, #tpu.memory_space<vmem>>, %arg4: memref<1x3x16x256xf32, #tpu.memory_space<vmem>>, %arg5: memref<1x3x4x256xf32, #tpu.memory_space<vmem>>, %arg6: memref<1x4x4x4xf32, #tpu.memory_space<vmem>>, %arg7: memref<1x1x1xf32, #tpu.memory_space<vmem>>) attributes {dimension_semantics = [#tpu.dimension_semantics<parallel>], iteration_bounds = array<i64: 1>, scalar_prefetch = 0 : i64, scratch_operands = 0 : i64, tpu.core_type = #tpu.core_type<tc>, window_params = [{transform_indices = @transform_0, window_bounds = array<i64: 1, 16, 256>}, {transform_indices = @transform_1, window_bounds = array<i64: 1, 16, 256>}, {transform_indices = @transform_2, window_bounds = array<i64: 1, 16, 256>}, {transform_indices = @transform_3, window_bounds = array<i64: 1, 3, 16, 256>}, {transform_indices = @transform_4, window_bounds = array<i64: 1, 3, 4, 256>}, {transform_indices = @transform_5, window_bounds = array<i64: 1, 4, 4, 4>}, {transform_indices = @transform_6, window_bounds = array<i64: 1, 1, 1>}]} {
    %c0 = arith.constant 0 : index
    %c0_0 = arith.constant 0 : index
    %c0_1 = arith.constant 0 : index
    %0 = vector.load %arg1[%c0, %c0_0, %c0_1] : memref<1x16x256xf32, #tpu.memory_space<vmem>>, vector<1x16x256xf32>
    %1 = vector.shape_cast %0 : vector<1x16x256xf32> to vector<16x256xf32>
    %2 = math.log %1 : vector<16x256xf32>
    %cst = arith.constant -1.000000e+02 : f32
    %3 = vector.broadcast %cst : f32 to vector<16x256xf32>
    %4 = arith.maximumf %2, %3 : vector<16x256xf32>
    %cst_2 = arith.constant 0.000000e+00 : f32
    %5 = vector.broadcast %cst_2 : f32 to vector<16x256xf32>
    %6 = arith.subf %5, %4 : vector<16x256xf32>
    %cst_3 = arith.constant 1.000000e+00 : f32
    %7 = vector.broadcast %cst_3 : f32 to vector<16x256xf32>
    %8 = arith.subf %7, %1 : vector<16x256xf32>
    %9 = math.log %8 : vector<16x256xf32>
    %cst_4 = arith.constant -1.000000e+02 : f32
    %10 = vector.broadcast %cst_4 : f32 to vector<16x256xf32>
    %11 = arith.maximumf %9, %10 : vector<16x256xf32>
    %cst_5 = arith.constant 0.000000e+00 : f32
    %12 = vector.broadcast %cst_5 : f32 to vector<16x256xf32>
    %13 = arith.subf %12, %11 : vector<16x256xf32>
    %c0_6 = arith.constant 0 : index
    %c0_7 = arith.constant 0 : index
    %c0_8 = arith.constant 0 : index
    %14 = vector.load %arg2[%c0_6, %c0_7, %c0_8] : memref<1x16x256xf32, #tpu.memory_space<vmem>>, vector<1x16x256xf32>
    %15 = vector.shape_cast %14 : vector<1x16x256xf32> to vector<16x256xf32>
    %cst_9 = arith.constant 5.000000e-01 : f32
    %16 = vector.broadcast %cst_9 : f32 to vector<16x256xf32>
    %17 = arith.cmpf ogt, %15, %16 : vector<16x256xf32>
    %18 = arith.extui %17 : vector<16x256xi1> to vector<16x256xi32>
    %19 = arith.sitofp %18 : vector<16x256xi32> to vector<16x256xf32>
    %cst_10 = arith.constant 1.000000e+00 : f32
    %20 = vector.broadcast %cst_10 : f32 to vector<16x256xf32>
    %21 = arith.subf %20, %19 : vector<16x256xf32>
    %c0_11 = arith.constant 0 : index
    %c0_12 = arith.constant 0 : index
    %c0_13 = arith.constant 0 : index
    %22 = vector.load %arg3[%c0_11, %c0_12, %c0_13] : memref<1x16x256xf32, #tpu.memory_space<vmem>>, vector<1x16x256xf32>
    %23 = vector.shape_cast %22 : vector<1x16x256xf32> to vector<16x256xf32>
    %cst_14 = arith.constant 5.000000e-01 : f32
    %24 = vector.broadcast %cst_14 : f32 to vector<16x256xf32>
    %25 = arith.cmpf ogt, %23, %24 : vector<16x256xf32>
    %26 = arith.extui %25 : vector<16x256xi1> to vector<16x256xi32>
    %27 = arith.sitofp %26 : vector<16x256xi32> to vector<16x256xf32>
    %c0_15 = arith.constant 0 : index
    %c0_16 = arith.constant 0 : index
    %c0_17 = arith.constant 0 : index
    %c0_18 = arith.constant 0 : index
    %28 = vector.load %arg6[%c0_15, %c0_16, %c0_17, %c0_18] : memref<1x4x4x4xf32, #tpu.memory_space<vmem>>, vector<1x4x4x4xf32>
    %29 = vector.shape_cast %28 : vector<1x4x4x4xf32> to vector<4x4x4xf32>
    %cst_19 = arith.constant 0.000000e+00 : f32
    %30 = vector.broadcast %cst_19 : f32 to vector<1x1xf32>
    %31 = vector.extract_strided_slice %19 {offsets = [0, 0], sizes = [4, 256], strides = [1, 1]} : vector<16x256xf32> to vector<4x256xf32>
    %32 = vector.extract_strided_slice %21 {offsets = [0, 0], sizes = [4, 256], strides = [1, 1]} : vector<16x256xf32> to vector<4x256xf32>
    %33 = vector.extract_strided_slice %27 {offsets = [0, 0], sizes = [4, 256], strides = [1, 1]} : vector<16x256xf32> to vector<4x256xf32>
    %34 = vector.extract_strided_slice %6 {offsets = [0, 0], sizes = [4, 256], strides = [1, 1]} : vector<16x256xf32> to vector<4x256xf32>
    %35 = vector.extract_strided_slice %13 {offsets = [0, 0], sizes = [4, 256], strides = [1, 1]} : vector<16x256xf32> to vector<4x256xf32>
    %cst_20 = arith.constant dense<0.000000e+00> : vector<4x4xf32>
    %36 = tpu.matmul %31, %34, %cst_20 {dimension_numbers = #tpu.dot_dimension_numbers<[1], [1], [0], [0], [0, 0, 1, 0], [], []>} : vector<4x256xf32>, vector<4x256xf32>, vector<4x4xf32> -> vector<4x4xf32>
    %cst_21 = arith.constant dense<0.000000e+00> : vector<4x4xf32>
    %37 = tpu.matmul %32, %35, %cst_21 {dimension_numbers = #tpu.dot_dimension_numbers<[1], [1], [0], [0], [0, 0, 1, 0], [], []>} : vector<4x256xf32>, vector<4x256xf32>, vector<4x4xf32> -> vector<4x4xf32>
    %38 = arith.addf %36, %37 : vector<4x4xf32>
    %c0_22 = arith.constant 0 : index
    %c0_23 = arith.constant 0 : index
    %c0_24 = arith.constant 0 : index
    %c0_25 = arith.constant 0 : index
    %39 = vector.load %arg4[%c0_22, %c0_23, %c0_24, %c0_25] : memref<1x3x16x256xf32, #tpu.memory_space<vmem>>, vector<1x1x4x256xf32>
    %40 = vector.shape_cast %39 : vector<1x1x4x256xf32> to vector<4x256xf32>
    %c0_26 = arith.constant 0 : index
    %c0_27 = arith.constant 0 : index
    %c0_28 = arith.constant 0 : index
    %c0_29 = arith.constant 0 : index
    %41 = vector.load %arg5[%c0_26, %c0_27, %c0_28, %c0_29] : memref<1x3x4x256xf32, #tpu.memory_space<vmem>>, vector<1x1x1x256xf32>
    %42 = vector.shape_cast %41 : vector<1x1x1x256xf32> to vector<1x256xf32>
    %43 = vector.broadcast %42 : vector<1x256xf32> to vector<4x256xf32>
    %44 = arith.subf %40, %43 : vector<4x256xf32>
    %45 = arith.mulf %44, %44 : vector<4x256xf32>
    %c0_30 = arith.constant 0 : index
    %c1 = arith.constant 1 : index
    %c0_31 = arith.constant 0 : index
    %c0_32 = arith.constant 0 : index
    %46 = vector.load %arg4[%c0_30, %c1, %c0_31, %c0_32] : memref<1x3x16x256xf32, #tpu.memory_space<vmem>>, vector<1x1x4x256xf32>
    %47 = vector.shape_cast %46 : vector<1x1x4x256xf32> to vector<4x256xf32>
    %c0_33 = arith.constant 0 : index
    %c1_34 = arith.constant 1 : index
    %c0_35 = arith.constant 0 : index
    %c0_36 = arith.constant 0 : index
    %48 = vector.load %arg5[%c0_33, %c1_34, %c0_35, %c0_36] : memref<1x3x4x256xf32, #tpu.memory_space<vmem>>, vector<1x1x1x256xf32>
    %49 = vector.shape_cast %48 : vector<1x1x1x256xf32> to vector<1x256xf32>
    %50 = vector.broadcast %49 : vector<1x256xf32> to vector<4x256xf32>
    %51 = arith.subf %47, %50 : vector<4x256xf32>
    %52 = arith.mulf %51, %51 : vector<4x256xf32>
    %53 = arith.addf %45, %52 : vector<4x256xf32>
    %c0_37 = arith.constant 0 : index
    %c2 = arith.constant 2 : index
    %c0_38 = arith.constant 0 : index
    %c0_39 = arith.constant 0 : index
    %54 = vector.load %arg4[%c0_37, %c2, %c0_38, %c0_39] : memref<1x3x16x256xf32, #tpu.memory_space<vmem>>, vector<1x1x4x256xf32>
    %55 = vector.shape_cast %54 : vector<1x1x4x256xf32> to vector<4x256xf32>
    %c0_40 = arith.constant 0 : index
    %c2_41 = arith.constant 2 : index
    %c0_42 = arith.constant 0 : index
    %c0_43 = arith.constant 0 : index
    %56 = vector.load %arg5[%c0_40, %c2_41, %c0_42, %c0_43] : memref<1x3x4x256xf32, #tpu.memory_space<vmem>>, vector<1x1x1x256xf32>
    %57 = vector.shape_cast %56 : vector<1x1x1x256xf32> to vector<1x256xf32>
    %58 = vector.broadcast %57 : vector<1x256xf32> to vector<4x256xf32>
    %59 = arith.subf %55, %58 : vector<4x256xf32>
    %60 = arith.mulf %59, %59 : vector<4x256xf32>
    %61 = arith.addf %53, %60 : vector<4x256xf32>
    %cst_44 = arith.constant dense<0.000000e+00> : vector<4x4xf32>
    %62 = tpu.matmul %33, %61, %cst_44 {dimension_numbers = #tpu.dot_dimension_numbers<[1], [1], [0], [0], [0, 0, 1, 0], [], []>} : vector<4x256xf32>, vector<4x256xf32>, vector<4x4xf32> -> vector<4x4xf32>
    %cst_45 = arith.constant 3.906250e-03 : f32
    %63 = vector.broadcast %cst_45 : f32 to vector<4x4xf32>
    %64 = arith.mulf %38, %63 : vector<4x4xf32>
    %cst_46 = arith.constant 1.000000e-01 : f32
    %65 = vector.broadcast %cst_46 : f32 to vector<4x4xf32>
    %66 = arith.mulf %65, %62 : vector<4x4xf32>
    %67 = arith.addf %64, %66 : vector<4x4xf32>
    %68 = vector.extract_strided_slice %29 {offsets = [0, 0, 0], sizes = [1, 4, 4], strides = [1, 1, 1]} : vector<4x4x4xf32> to vector<1x4x4xf32>
    %69 = vector.shape_cast %68 : vector<1x4x4xf32> to vector<4x4xf32>
    %70 = arith.mulf %69, %67 : vector<4x4xf32>
    %71 = vector.shape_cast %70 : vector<4x4xf32> to vector<1x4x4xf32>
    %cst_47 = arith.constant dense<0.000000e+00> : vector<1xf32>
    %72 = vector.multi_reduction <add>, %71, %cst_47 [1, 2] : vector<1x4x4xf32> to vector<1xf32>
    %73 = vector.shape_cast %72 : vector<1xf32> to vector<1x1x1xf32>
    %74 = vector.extract %73[0, 0, 0] : f32 from vector<1x1x1xf32>
    %75 = vector.broadcast %74 : f32 to vector<1x1xf32>
    %76 = arith.addf %30, %75 : vector<1x1xf32>
    %77 = vector.extract_strided_slice %19 {offsets = [4, 0], sizes = [4, 256], strides = [1, 1]} : vector<16x256xf32> to vector<4x256xf32>
    %78 = vector.extract_strided_slice %21 {offsets = [4, 0], sizes = [4, 256], strides = [1, 1]} : vector<16x256xf32> to vector<4x256xf32>
    %79 = vector.extract_strided_slice %27 {offsets = [4, 0], sizes = [4, 256], strides = [1, 1]} : vector<16x256xf32> to vector<4x256xf32>
    %80 = vector.extract_strided_slice %6 {offsets = [4, 0], sizes = [4, 256], strides = [1, 1]} : vector<16x256xf32> to vector<4x256xf32>
    %81 = vector.extract_strided_slice %13 {offsets = [4, 0], sizes = [4, 256], strides = [1, 1]} : vector<16x256xf32> to vector<4x256xf32>
    %cst_48 = arith.constant dense<0.000000e+00> : vector<4x4xf32>
    %82 = tpu.matmul %77, %80, %cst_48 {dimension_numbers = #tpu.dot_dimension_numbers<[1], [1], [0], [0], [0, 0, 1, 0], [], []>} : vector<4x256xf32>, vector<4x256xf32>, vector<4x4xf32> -> vector<4x4xf32>
    %cst_49 = arith.constant dense<0.000000e+00> : vector<4x4xf32>
    %83 = tpu.matmul %78, %81, %cst_49 {dimension_numbers = #tpu.dot_dimension_numbers<[1], [1], [0], [0], [0, 0, 1, 0], [], []>} : vector<4x256xf32>, vector<4x256xf32>, vector<4x4xf32> -> vector<4x4xf32>
    %84 = arith.addf %82, %83 : vector<4x4xf32>
    %c0_50 = arith.constant 0 : index
    %c0_51 = arith.constant 0 : index
    %c4 = arith.constant 4 : index
    %c0_52 = arith.constant 0 : index
    %85 = vector.load %arg4[%c0_50, %c0_51, %c4, %c0_52] : memref<1x3x16x256xf32, #tpu.memory_space<vmem>>, vector<1x1x4x256xf32>
    %86 = vector.shape_cast %85 : vector<1x1x4x256xf32> to vector<4x256xf32>
    %c0_53 = arith.constant 0 : index
    %c0_54 = arith.constant 0 : index
    %c1_55 = arith.constant 1 : index
    %c0_56 = arith.constant 0 : index
    %87 = vector.load %arg5[%c0_53, %c0_54, %c1_55, %c0_56] : memref<1x3x4x256xf32, #tpu.memory_space<vmem>>, vector<1x1x1x256xf32>
    %88 = vector.shape_cast %87 : vector<1x1x1x256xf32> to vector<1x256xf32>
    %89 = vector.broadcast %88 : vector<1x256xf32> to vector<4x256xf32>
    %90 = arith.subf %86, %89 : vector<4x256xf32>
    %91 = arith.mulf %90, %90 : vector<4x256xf32>
    %c0_57 = arith.constant 0 : index
    %c1_58 = arith.constant 1 : index
    %c4_59 = arith.constant 4 : index
    %c0_60 = arith.constant 0 : index
    %92 = vector.load %arg4[%c0_57, %c1_58, %c4_59, %c0_60] : memref<1x3x16x256xf32, #tpu.memory_space<vmem>>, vector<1x1x4x256xf32>
    %93 = vector.shape_cast %92 : vector<1x1x4x256xf32> to vector<4x256xf32>
    %c0_61 = arith.constant 0 : index
    %c1_62 = arith.constant 1 : index
    %c1_63 = arith.constant 1 : index
    %c0_64 = arith.constant 0 : index
    %94 = vector.load %arg5[%c0_61, %c1_62, %c1_63, %c0_64] : memref<1x3x4x256xf32, #tpu.memory_space<vmem>>, vector<1x1x1x256xf32>
    %95 = vector.shape_cast %94 : vector<1x1x1x256xf32> to vector<1x256xf32>
    %96 = vector.broadcast %95 : vector<1x256xf32> to vector<4x256xf32>
    %97 = arith.subf %93, %96 : vector<4x256xf32>
    %98 = arith.mulf %97, %97 : vector<4x256xf32>
    %99 = arith.addf %91, %98 : vector<4x256xf32>
    %c0_65 = arith.constant 0 : index
    %c2_66 = arith.constant 2 : index
    %c4_67 = arith.constant 4 : index
    %c0_68 = arith.constant 0 : index
    %100 = vector.load %arg4[%c0_65, %c2_66, %c4_67, %c0_68] : memref<1x3x16x256xf32, #tpu.memory_space<vmem>>, vector<1x1x4x256xf32>
    %101 = vector.shape_cast %100 : vector<1x1x4x256xf32> to vector<4x256xf32>
    %c0_69 = arith.constant 0 : index
    %c2_70 = arith.constant 2 : index
    %c1_71 = arith.constant 1 : index
    %c0_72 = arith.constant 0 : index
    %102 = vector.load %arg5[%c0_69, %c2_70, %c1_71, %c0_72] : memref<1x3x4x256xf32, #tpu.memory_space<vmem>>, vector<1x1x1x256xf32>
    %103 = vector.shape_cast %102 : vector<1x1x1x256xf32> to vector<1x256xf32>
    %104 = vector.broadcast %103 : vector<1x256xf32> to vector<4x256xf32>
    %105 = arith.subf %101, %104 : vector<4x256xf32>
    %106 = arith.mulf %105, %105 : vector<4x256xf32>
    %107 = arith.addf %99, %106 : vector<4x256xf32>
    %cst_73 = arith.constant dense<0.000000e+00> : vector<4x4xf32>
    %108 = tpu.matmul %79, %107, %cst_73 {dimension_numbers = #tpu.dot_dimension_numbers<[1], [1], [0], [0], [0, 0, 1, 0], [], []>} : vector<4x256xf32>, vector<4x256xf32>, vector<4x4xf32> -> vector<4x4xf32>
    %cst_74 = arith.constant 3.906250e-03 : f32
    %109 = vector.broadcast %cst_74 : f32 to vector<4x4xf32>
    %110 = arith.mulf %84, %109 : vector<4x4xf32>
    %cst_75 = arith.constant 1.000000e-01 : f32
    %111 = vector.broadcast %cst_75 : f32 to vector<4x4xf32>
    %112 = arith.mulf %111, %108 : vector<4x4xf32>
    %113 = arith.addf %110, %112 : vector<4x4xf32>
    %114 = vector.extract_strided_slice %29 {offsets = [1, 0, 0], sizes = [1, 4, 4], strides = [1, 1, 1]} : vector<4x4x4xf32> to vector<1x4x4xf32>
    %115 = vector.shape_cast %114 : vector<1x4x4xf32> to vector<4x4xf32>
    %116 = arith.mulf %115, %113 : vector<4x4xf32>
    %117 = vector.shape_cast %116 : vector<4x4xf32> to vector<1x4x4xf32>
    %cst_76 = arith.constant dense<0.000000e+00> : vector<1xf32>
    %118 = vector.multi_reduction <add>, %117, %cst_76 [1, 2] : vector<1x4x4xf32> to vector<1xf32>
    %119 = vector.shape_cast %118 : vector<1xf32> to vector<1x1x1xf32>
    %120 = vector.extract %119[0, 0, 0] : f32 from vector<1x1x1xf32>
    %121 = vector.broadcast %120 : f32 to vector<1x1xf32>
    %122 = arith.addf %76, %121 : vector<1x1xf32>
    %123 = vector.extract_strided_slice %19 {offsets = [8, 0], sizes = [4, 256], strides = [1, 1]} : vector<16x256xf32> to vector<4x256xf32>
    %124 = vector.extract_strided_slice %21 {offsets = [8, 0], sizes = [4, 256], strides = [1, 1]} : vector<16x256xf32> to vector<4x256xf32>
    %125 = vector.extract_strided_slice %27 {offsets = [8, 0], sizes = [4, 256], strides = [1, 1]} : vector<16x256xf32> to vector<4x256xf32>
    %126 = vector.extract_strided_slice %6 {offsets = [8, 0], sizes = [4, 256], strides = [1, 1]} : vector<16x256xf32> to vector<4x256xf32>
    %127 = vector.extract_strided_slice %13 {offsets = [8, 0], sizes = [4, 256], strides = [1, 1]} : vector<16x256xf32> to vector<4x256xf32>
    %cst_77 = arith.constant dense<0.000000e+00> : vector<4x4xf32>
    %128 = tpu.matmul %123, %126, %cst_77 {dimension_numbers = #tpu.dot_dimension_numbers<[1], [1], [0], [0], [0, 0, 1, 0], [], []>} : vector<4x256xf32>, vector<4x256xf32>, vector<4x4xf32> -> vector<4x4xf32>
    %cst_78 = arith.constant dense<0.000000e+00> : vector<4x4xf32>
    %129 = tpu.matmul %124, %127, %cst_78 {dimension_numbers = #tpu.dot_dimension_numbers<[1], [1], [0], [0], [0, 0, 1, 0], [], []>} : vector<4x256xf32>, vector<4x256xf32>, vector<4x4xf32> -> vector<4x4xf32>
    %130 = arith.addf %128, %129 : vector<4x4xf32>
    %c0_79 = arith.constant 0 : index
    %c0_80 = arith.constant 0 : index
    %c8 = arith.constant 8 : index
    %c0_81 = arith.constant 0 : index
    %131 = vector.load %arg4[%c0_79, %c0_80, %c8, %c0_81] : memref<1x3x16x256xf32, #tpu.memory_space<vmem>>, vector<1x1x4x256xf32>
    %132 = vector.shape_cast %131 : vector<1x1x4x256xf32> to vector<4x256xf32>
    %c0_82 = arith.constant 0 : index
    %c0_83 = arith.constant 0 : index
    %c2_84 = arith.constant 2 : index
    %c0_85 = arith.constant 0 : index
    %133 = vector.load %arg5[%c0_82, %c0_83, %c2_84, %c0_85] : memref<1x3x4x256xf32, #tpu.memory_space<vmem>>, vector<1x1x1x256xf32>
    %134 = vector.shape_cast %133 : vector<1x1x1x256xf32> to vector<1x256xf32>
    %135 = vector.broadcast %134 : vector<1x256xf32> to vector<4x256xf32>
    %136 = arith.subf %132, %135 : vector<4x256xf32>
    %137 = arith.mulf %136, %136 : vector<4x256xf32>
    %c0_86 = arith.constant 0 : index
    %c1_87 = arith.constant 1 : index
    %c8_88 = arith.constant 8 : index
    %c0_89 = arith.constant 0 : index
    %138 = vector.load %arg4[%c0_86, %c1_87, %c8_88, %c0_89] : memref<1x3x16x256xf32, #tpu.memory_space<vmem>>, vector<1x1x4x256xf32>
    %139 = vector.shape_cast %138 : vector<1x1x4x256xf32> to vector<4x256xf32>
    %c0_90 = arith.constant 0 : index
    %c1_91 = arith.constant 1 : index
    %c2_92 = arith.constant 2 : index
    %c0_93 = arith.constant 0 : index
    %140 = vector.load %arg5[%c0_90, %c1_91, %c2_92, %c0_93] : memref<1x3x4x256xf32, #tpu.memory_space<vmem>>, vector<1x1x1x256xf32>
    %141 = vector.shape_cast %140 : vector<1x1x1x256xf32> to vector<1x256xf32>
    %142 = vector.broadcast %141 : vector<1x256xf32> to vector<4x256xf32>
    %143 = arith.subf %139, %142 : vector<4x256xf32>
    %144 = arith.mulf %143, %143 : vector<4x256xf32>
    %145 = arith.addf %137, %144 : vector<4x256xf32>
    %c0_94 = arith.constant 0 : index
    %c2_95 = arith.constant 2 : index
    %c8_96 = arith.constant 8 : index
    %c0_97 = arith.constant 0 : index
    %146 = vector.load %arg4[%c0_94, %c2_95, %c8_96, %c0_97] : memref<1x3x16x256xf32, #tpu.memory_space<vmem>>, vector<1x1x4x256xf32>
    %147 = vector.shape_cast %146 : vector<1x1x4x256xf32> to vector<4x256xf32>
    %c0_98 = arith.constant 0 : index
    %c2_99 = arith.constant 2 : index
    %c2_100 = arith.constant 2 : index
    %c0_101 = arith.constant 0 : index
    %148 = vector.load %arg5[%c0_98, %c2_99, %c2_100, %c0_101] : memref<1x3x4x256xf32, #tpu.memory_space<vmem>>, vector<1x1x1x256xf32>
    %149 = vector.shape_cast %148 : vector<1x1x1x256xf32> to vector<1x256xf32>
    %150 = vector.broadcast %149 : vector<1x256xf32> to vector<4x256xf32>
    %151 = arith.subf %147, %150 : vector<4x256xf32>
    %152 = arith.mulf %151, %151 : vector<4x256xf32>
    %153 = arith.addf %145, %152 : vector<4x256xf32>
    %cst_102 = arith.constant dense<0.000000e+00> : vector<4x4xf32>
    %154 = tpu.matmul %125, %153, %cst_102 {dimension_numbers = #tpu.dot_dimension_numbers<[1], [1], [0], [0], [0, 0, 1, 0], [], []>} : vector<4x256xf32>, vector<4x256xf32>, vector<4x4xf32> -> vector<4x4xf32>
    %cst_103 = arith.constant 3.906250e-03 : f32
    %155 = vector.broadcast %cst_103 : f32 to vector<4x4xf32>
    %156 = arith.mulf %130, %155 : vector<4x4xf32>
    %cst_104 = arith.constant 1.000000e-01 : f32
    %157 = vector.broadcast %cst_104 : f32 to vector<4x4xf32>
    %158 = arith.mulf %157, %154 : vector<4x4xf32>
    %159 = arith.addf %156, %158 : vector<4x4xf32>
    %160 = vector.extract_strided_slice %29 {offsets = [2, 0, 0], sizes = [1, 4, 4], strides = [1, 1, 1]} : vector<4x4x4xf32> to vector<1x4x4xf32>
    %161 = vector.shape_cast %160 : vector<1x4x4xf32> to vector<4x4xf32>
    %162 = arith.mulf %161, %159 : vector<4x4xf32>
    %163 = vector.shape_cast %162 : vector<4x4xf32> to vector<1x4x4xf32>
    %cst_105 = arith.constant dense<0.000000e+00> : vector<1xf32>
    %164 = vector.multi_reduction <add>, %163, %cst_105 [1, 2] : vector<1x4x4xf32> to vector<1xf32>
    %165 = vector.shape_cast %164 : vector<1xf32> to vector<1x1x1xf32>
    %166 = vector.extract %165[0, 0, 0] : f32 from vector<1x1x1xf32>
    %167 = vector.broadcast %166 : f32 to vector<1x1xf32>
    %168 = arith.addf %122, %167 : vector<1x1xf32>
    %169 = vector.extract_strided_slice %19 {offsets = [12, 0], sizes = [4, 256], strides = [1, 1]} : vector<16x256xf32> to vector<4x256xf32>
    %170 = vector.extract_strided_slice %21 {offsets = [12, 0], sizes = [4, 256], strides = [1, 1]} : vector<16x256xf32> to vector<4x256xf32>
    %171 = vector.extract_strided_slice %27 {offsets = [12, 0], sizes = [4, 256], strides = [1, 1]} : vector<16x256xf32> to vector<4x256xf32>
    %172 = vector.extract_strided_slice %6 {offsets = [12, 0], sizes = [4, 256], strides = [1, 1]} : vector<16x256xf32> to vector<4x256xf32>
    %173 = vector.extract_strided_slice %13 {offsets = [12, 0], sizes = [4, 256], strides = [1, 1]} : vector<16x256xf32> to vector<4x256xf32>
    %cst_106 = arith.constant dense<0.000000e+00> : vector<4x4xf32>
    %174 = tpu.matmul %169, %172, %cst_106 {dimension_numbers = #tpu.dot_dimension_numbers<[1], [1], [0], [0], [0, 0, 1, 0], [], []>} : vector<4x256xf32>, vector<4x256xf32>, vector<4x4xf32> -> vector<4x4xf32>
    %cst_107 = arith.constant dense<0.000000e+00> : vector<4x4xf32>
    %175 = tpu.matmul %170, %173, %cst_107 {dimension_numbers = #tpu.dot_dimension_numbers<[1], [1], [0], [0], [0, 0, 1, 0], [], []>} : vector<4x256xf32>, vector<4x256xf32>, vector<4x4xf32> -> vector<4x4xf32>
    %176 = arith.addf %174, %175 : vector<4x4xf32>
    %c0_108 = arith.constant 0 : index
    %c0_109 = arith.constant 0 : index
    %c12 = arith.constant 12 : index
    %c0_110 = arith.constant 0 : index
    %177 = vector.load %arg4[%c0_108, %c0_109, %c12, %c0_110] : memref<1x3x16x256xf32, #tpu.memory_space<vmem>>, vector<1x1x4x256xf32>
    %178 = vector.shape_cast %177 : vector<1x1x4x256xf32> to vector<4x256xf32>
    %c0_111 = arith.constant 0 : index
    %c0_112 = arith.constant 0 : index
    %c3 = arith.constant 3 : index
    %c0_113 = arith.constant 0 : index
    %179 = vector.load %arg5[%c0_111, %c0_112, %c3, %c0_113] : memref<1x3x4x256xf32, #tpu.memory_space<vmem>>, vector<1x1x1x256xf32>
    %180 = vector.shape_cast %179 : vector<1x1x1x256xf32> to vector<1x256xf32>
    %181 = vector.broadcast %180 : vector<1x256xf32> to vector<4x256xf32>
    %182 = arith.subf %178, %181 : vector<4x256xf32>
    %183 = arith.mulf %182, %182 : vector<4x256xf32>
    %c0_114 = arith.constant 0 : index
    %c1_115 = arith.constant 1 : index
    %c12_116 = arith.constant 12 : index
    %c0_117 = arith.constant 0 : index
    %184 = vector.load %arg4[%c0_114, %c1_115, %c12_116, %c0_117] : memref<1x3x16x256xf32, #tpu.memory_space<vmem>>, vector<1x1x4x256xf32>
    %185 = vector.shape_cast %184 : vector<1x1x4x256xf32> to vector<4x256xf32>
    %c0_118 = arith.constant 0 : index
    %c1_119 = arith.constant 1 : index
    %c3_120 = arith.constant 3 : index
    %c0_121 = arith.constant 0 : index
    %186 = vector.load %arg5[%c0_118, %c1_119, %c3_120, %c0_121] : memref<1x3x4x256xf32, #tpu.memory_space<vmem>>, vector<1x1x1x256xf32>
    %187 = vector.shape_cast %186 : vector<1x1x1x256xf32> to vector<1x256xf32>
    %188 = vector.broadcast %187 : vector<1x256xf32> to vector<4x256xf32>
    %189 = arith.subf %185, %188 : vector<4x256xf32>
    %190 = arith.mulf %189, %189 : vector<4x256xf32>
    %191 = arith.addf %183, %190 : vector<4x256xf32>
    %c0_122 = arith.constant 0 : index
    %c2_123 = arith.constant 2 : index
    %c12_124 = arith.constant 12 : index
    %c0_125 = arith.constant 0 : index
    %192 = vector.load %arg4[%c0_122, %c2_123, %c12_124, %c0_125] : memref<1x3x16x256xf32, #tpu.memory_space<vmem>>, vector<1x1x4x256xf32>
    %193 = vector.shape_cast %192 : vector<1x1x4x256xf32> to vector<4x256xf32>
    %c0_126 = arith.constant 0 : index
    %c2_127 = arith.constant 2 : index
    %c3_128 = arith.constant 3 : index
    %c0_129 = arith.constant 0 : index
    %194 = vector.load %arg5[%c0_126, %c2_127, %c3_128, %c0_129] : memref<1x3x4x256xf32, #tpu.memory_space<vmem>>, vector<1x1x1x256xf32>
    %195 = vector.shape_cast %194 : vector<1x1x1x256xf32> to vector<1x256xf32>
    %196 = vector.broadcast %195 : vector<1x256xf32> to vector<4x256xf32>
    %197 = arith.subf %193, %196 : vector<4x256xf32>
    %198 = arith.mulf %197, %197 : vector<4x256xf32>
    %199 = arith.addf %191, %198 : vector<4x256xf32>
    %cst_130 = arith.constant dense<0.000000e+00> : vector<4x4xf32>
    %200 = tpu.matmul %171, %199, %cst_130 {dimension_numbers = #tpu.dot_dimension_numbers<[1], [1], [0], [0], [0, 0, 1, 0], [], []>} : vector<4x256xf32>, vector<4x256xf32>, vector<4x4xf32> -> vector<4x4xf32>
    %cst_131 = arith.constant 3.906250e-03 : f32
    %201 = vector.broadcast %cst_131 : f32 to vector<4x4xf32>
    %202 = arith.mulf %176, %201 : vector<4x4xf32>
    %cst_132 = arith.constant 1.000000e-01 : f32
    %203 = vector.broadcast %cst_132 : f32 to vector<4x4xf32>
    %204 = arith.mulf %203, %200 : vector<4x4xf32>
    %205 = arith.addf %202, %204 : vector<4x4xf32>
    %206 = vector.extract_strided_slice %29 {offsets = [3, 0, 0], sizes = [1, 4, 4], strides = [1, 1, 1]} : vector<4x4x4xf32> to vector<1x4x4xf32>
    %207 = vector.shape_cast %206 : vector<1x4x4xf32> to vector<4x4xf32>
    %208 = arith.mulf %207, %205 : vector<4x4xf32>
    %209 = vector.shape_cast %208 : vector<4x4xf32> to vector<1x4x4xf32>
    %cst_133 = arith.constant dense<0.000000e+00> : vector<1xf32>
    %210 = vector.multi_reduction <add>, %209, %cst_133 [1, 2] : vector<1x4x4xf32> to vector<1xf32>
    %211 = vector.shape_cast %210 : vector<1xf32> to vector<1x1x1xf32>
    %212 = vector.extract %211[0, 0, 0] : f32 from vector<1x1x1xf32>
    %213 = vector.broadcast %212 : f32 to vector<1x1xf32>
    %214 = arith.addf %168, %213 : vector<1x1xf32>
    %c0_134 = arith.constant 0 : index
    %c0_135 = arith.constant 0 : index
    %c0_136 = arith.constant 0 : index
    %215 = vector.load %arg7[%c0_134, %c0_135, %c0_136] : memref<1x1x1xf32, #tpu.memory_space<vmem>>, vector<1x1x1xf32>
    %216 = vector.shape_cast %215 : vector<1x1x1xf32> to vector<1x1xf32>
    %217 = vector.shape_cast %214 : vector<1x1xf32> to vector<1x1x1xf32>
    tpu.vector_store %arg7[%c0_134, %c0_135, %c0_136], %217 {strides = array<i32>} : memref<1x1x1xf32, #tpu.memory_space<vmem>>, vector<1x1x1xf32>,
    return
  }
  func.func @transform_0(%arg0: i32) -> (i32, i32, i32) {
    %c0_i32 = arith.constant 0 : i32
    %c0_i32_0 = arith.constant 0 : i32
    %c0_i32_1 = arith.constant 0 : i32
    return %arg0, %c0_i32, %c0_i32_0 : i32, i32, i32
  }
  func.func @transform_1(%arg0: i32) -> (i32, i32, i32) {
    %c0_i32 = arith.constant 0 : i32
    %c0_i32_0 = arith.constant 0 : i32
    %c0_i32_1 = arith.constant 0 : i32
    return %arg0, %c0_i32, %c0_i32_0 : i32, i32, i32
  }
  func.func @transform_2(%arg0: i32) -> (i32, i32, i32) {
    %c0_i32 = arith.constant 0 : i32
    %c0_i32_0 = arith.constant 0 : i32
    %c0_i32_1 = arith.constant 0 : i32
    return %arg0, %c0_i32, %c0_i32_0 : i32, i32, i32
  }
  func.func @transform_3(%arg0: i32) -> (i32, i32, i32, i32) {
    %c0_i32 = arith.constant 0 : i32
    %c0_i32_0 = arith.constant 0 : i32
    %c0_i32_1 = arith.constant 0 : i32
    %c0_i32_2 = arith.constant 0 : i32
    return %arg0, %c0_i32, %c0_i32_0, %c0_i32_1 : i32, i32, i32, i32
  }
  func.func @transform_4(%arg0: i32) -> (i32, i32, i32, i32) {
    %c0_i32 = arith.constant 0 : i32
    %c0_i32_0 = arith.constant 0 : i32
    %c0_i32_1 = arith.constant 0 : i32
    %c0_i32_2 = arith.constant 0 : i32
    return %arg0, %c0_i32, %c0_i32_0, %c0_i32_1 : i32, i32, i32, i32
  }
  func.func @transform_5(%arg0: i32) -> (i32, i32, i32, i32) {
    %c0_i32 = arith.constant 0 : i32
    %c0_i32_0 = arith.constant 0 : i32
    %c0_i32_1 = arith.constant 0 : i32
    %c0_i32_2 = arith.constant 0 : i32
    return %arg0, %c0_i32, %c0_i32_0, %c0_i32_1 : i32, i32, i32, i32
  }
  func.func @transform_6(%arg0: i32) -> (i32, i32, i32) {
    %c0_i32 = arith.constant 0 : i32
    %c0_i32_0 = arith.constant 0 : i32
    %c0_i32_1 = arith.constant 0 : i32
    return %arg0, %c0_i32, %c0_i32_0 : i32, i32, i32
  }
}

</mosaic_0001>

<llo_original>
// kernel: tpu_custom_call.1
$region0: #{tpu_custom_call.1}
  #allocation0 [shape = 'u32[]', space=smem, size = 0x4, offset = 0x4, fixed_abs, tag = 'smem constant byte address 0x4 - core index']
  #allocation1 [shape = 'u32[144,128]{1,0:T(1,128)}', space=vmem, size = 0x12000, scoped, tag = 'internal scratch']
  %s0 = inlined_call_operand.hbm [shape: f32[1,16,256], index: 0, kind: input, shape index: {}]
  %s1 = inlined_call_operand.hbm [shape: f32[1,16,256], index: 1, kind: input, shape index: {}]
  %s2 = inlined_call_operand.hbm [shape: f32[1,16,256], index: 2, kind: input, shape index: {}]
  %s3 = inlined_call_operand.hbm [shape: f32[1,3,16,256], index: 3, kind: input, shape index: {}]
  %s4 = inlined_call_operand.hbm [shape: f32[1,3,4,256], index: 4, kind: input, shape index: {}]
  %s5 = inlined_call_operand.vmem [shape: f32[1,4,4,4], index: 5, kind: input, shape index: {}]
  %s6 = inlined_call_operand.hbm [shape: f32[1,1,1], index: 6, kind: output, shape index: {}]
  %s7 = sld [smem:[#allocation0]]
  $region54: #{tpu_custom_call.1} parent=0
    _
  %s9 = ssub.s32 1, %s7
  %s10 = scalar_select 0, %s9, %s7
  $region1: #{tpu_custom_call.1} parent=0
    #allocation2 [shape = 'u8[16384]{0}', space=vmem, size = 0x4000, scoped, tag = 'input window, operand 0, single buffered']
    #allocation3 [shape = 's32[1]{0}', space=sflag, size = 0x4, scoped, tag = 'scoped memory for tpu_custom_call.1']
    #allocation4 [shape = 's32[1]{0}', space=sflag, size = 0x4, scoped, tag = 'scoped memory for tpu_custom_call.1']
    #allocation5 [shape = 'u8[16384]{0}', space=vmem, size = 0x4000, scoped, tag = 'input window, operand 1, single buffered']
    #allocation6 [shape = 's32[1]{0}', space=sflag, size = 0x4, scoped, tag = 'scoped memory for tpu_custom_call.1']
    #allocation7 [shape = 'u8[16384]{0}', space=vmem, size = 0x4000, scoped, tag = 'input window, operand 2, single buffered']
    #allocation8 [shape = 'u8[49152]{0}', space=vmem, size = 0xc000, scoped, tag = 'input window, operand 3, single buffered']
    #allocation9 [shape = 's32[1]{0}', space=sflag, size = 0x4, scoped, tag = 'scoped memory for tpu_custom_call.1']
    #allocation10 [shape = 'u8[12288]{0}', space=vmem, size = 0x3000, scoped, tag = 'input window, operand 4, single buffered']
    #allocation11 [shape = 'u8[512]{0}', space=vmem, size = 0x400, scoped, tag = 'output window, operand 0, single buffered']
    %11 = vsyncpa [#allocation3], 0
    %12 = vsyncpa [#allocation6], 0
    %13 = vsyncpa [#allocation9], 0
    %14 = vsyncpa [#allocation4], 0
    // Predicated region
    $region2: #{tpu_custom_call.1} parent=1 // pred_check
      _
    $region3: #{tpu_custom_call.1} parent=1 // pred_check_branch
      %16 = sbr.rel (0) target = $region5
    $region4: #{tpu_custom_call.1} parent=1 // pred_region
      %s18 = ssub.s32 512, 512
      %19 = vsyncadd [#allocation3], %s18
      %s20 = sshll.u32 [#allocation2], 4
      %s21 = int_to_ptr.vmem [resolvable:$true] %s20
      %26 = dma.hbm_to_vmem [thread:$0]  %s0, 512, %s21, [#allocation3], 256, 256, 16
    $region5: #{tpu_custom_call.1} parent=1 // pred_fallthru
      _
    // Predicated region
    $region6: #{tpu_custom_call.1} parent=1 // pred_check
      _
    $region7: #{tpu_custom_call.1} parent=1 // pred_check_branch
      %28 = sbr.rel (0) target = $region9
    $region8: #{tpu_custom_call.1} parent=1 // pred_region
      %s30 = ssub.s32 512, 512
      %31 = vsyncadd [#allocation6], %s30
      %s32 = sshll.u32 [#allocation5], 4
      %s33 = int_to_ptr.vmem [resolvable:$true] %s32
      %38 = dma.hbm_to_vmem [thread:$0]  %s1, 512, %s33, [#allocation6], 256, 256, 16
    $region9: #{tpu_custom_call.1} parent=1 // pred_fallthru
      _
    // Predicated region
    $region10: #{tpu_custom_call.1} parent=1 // pred_check
      _
    $region11: #{tpu_custom_call.1} parent=1 // pred_check_branch
      %40 = sbr.rel (0) target = $region13
    $region12: #{tpu_custom_call.1} parent=1 // pred_region
      %s42 = ssub.s32 512, 512
      %43 = vsyncadd [#allocation6], %s42
      %s44 = sshll.u32 [#allocation7], 4
      %s45 = int_to_ptr.vmem [resolvable:$true] %s44
      %50 = dma.hbm_to_vmem [thread:$0]  %s2, 512, %s45, [#allocation6], 256, 256, 16
    $region13: #{tpu_custom_call.1} parent=1 // pred_fallthru
      _
    // Predicated region
    $region14: #{tpu_custom_call.1} parent=1 // pred_check
      _
    $region15: #{tpu_custom_call.1} parent=1 // pred_check_branch
      %52 = sbr.rel (0) target = $region17
    $region16: #{tpu_custom_call.1} parent=1 // pred_region
      %s54 = ssub.s32 1536, 1536
      %55 = vsyncadd [#allocation9], %s54
      %s56 = sshll.u32 [#allocation8], 4
      %s57 = int_to_ptr.vmem [resolvable:$true] %s56
      %62 = dma.hbm_to_vmem [thread:$0]  %s3, 1536, %s57, [#allocation9], 256, 256, 16
    $region17: #{tpu_custom_call.1} parent=1 // pred_fallthru
      _
    // Predicated region
    $region18: #{tpu_custom_call.1} parent=1 // pred_check
      _
    $region19: #{tpu_custom_call.1} parent=1 // pred_check_branch
      %64 = sbr.rel (0) target = $region21
    $region20: #{tpu_custom_call.1} parent=1 // pred_region
      %s66 = ssub.s32 384, 384
      %67 = vsyncadd [#allocation9], %s66
      %s68 = sshll.u32 [#allocation10], 4
      %s69 = int_to_ptr.vmem [resolvable:$true] %s68
      %74 = dma.hbm_to_vmem [thread:$0]  %s4, 384, %s69, [#allocation9], 128, 128, 8
    $region21: #{tpu_custom_call.1} parent=1 // pred_fallthru
      _
    // Predicated region
    $region22: #{tpu_custom_call.1} parent=1 // pred_check
      _
    $region23: #{tpu_custom_call.1} parent=1 // pred_check_branch
      %76 = sbr.rel (0) target = $region25
    $region24: #{tpu_custom_call.1} parent=1 // pred_region
      _
    $region25: #{tpu_custom_call.1} parent=1 // pred_fallthru
      _
    // Predicated region
    $region26: #{tpu_custom_call.1} parent=1 // pred_check
      _
    $region27: #{tpu_custom_call.1} parent=1 // pred_check_branch
      %78 = sbr.rel (0) target = $region29
    $region28: #{tpu_custom_call.1} parent=1 // pred_region
      %79 = dma.done [#allocation3], 512
    $region29: #{tpu_custom_call.1} parent=1 // pred_fallthru
      _
    // Predicated region
    $region30: #{tpu_custom_call.1} parent=1 // pred_check
      _
    $region31: #{tpu_custom_call.1} parent=1 // pred_check_branch
      %81 = sbr.rel (0) target = $region33
    $region32: #{tpu_custom_call.1} parent=1 // pred_region
      %82 = dma.done [#allocation6], 512
    $region33: #{tpu_custom_call.1} parent=1 // pred_fallthru
      _
    // Predicated region
    $region34: #{tpu_custom_call.1} parent=1 // pred_check
      _
    $region35: #{tpu_custom_call.1} parent=1 // pred_check_branch
      %84 = sbr.rel (0) target = $region37
    $region36: #{tpu_custom_call.1} parent=1 // pred_region
      %85 = dma.done [#allocation6], 512
    $region37: #{tpu_custom_call.1} parent=1 // pred_fallthru
      _
    // Predicated region
    $region38: #{tpu_custom_call.1} parent=1 // pred_check
      _
    $region39: #{tpu_custom_call.1} parent=1 // pred_check_branch
      %87 = sbr.rel (0) target = $region41
    $region40: #{tpu_custom_call.1} parent=1 // pred_region
      %88 = dma.done [#allocation9], 1536
    $region41: #{tpu_custom_call.1} parent=1 // pred_fallthru
      _
    // Predicated region
    $region42: #{tpu_custom_call.1} parent=1 // pred_check
      _
    $region43: #{tpu_custom_call.1} parent=1 // pred_check_branch
      %90 = sbr.rel (0) target = $region45
    $region44: #{tpu_custom_call.1} parent=1 // pred_region
      %91 = dma.done [#allocation9], 384
    $region45: #{tpu_custom_call.1} parent=1 // pred_fallthru
      _
    %v92 = vld [vmem:[#allocation2] sm:$0xff]
    %v93 = vld [vmem:[#allocation2 + $0x8] sm:$0xff]
    %v94 = vld [vmem:[#allocation2 + $0x10] sm:$0xff]
    %v95 = vld [vmem:[#allocation2 + $0x18] sm:$0xff]
    %v96 = vlog2.pop %v92
    %v97 = vmul.f32 %v96, 0.6931472
    %v98 = vlog2.pop %v93
    %v99 = vmul.f32 %v98, 0.6931472
    %v100 = vlog2.pop %v94
    %v101 = vmul.f32 %v100, 0.6931472
    %v102 = vlog2.pop %v95
    %v103 = vmul.f32 %v102, 0.6931472
    %v104 = vmax.f32 %v97, -100.0
    %v105 = vmax.f32 %v99, -100.0
    %v106 = vmax.f32 %v101, -100.0
    %v107 = vmax.f32 %v103, -100.0
    %v108 = vsub.f32 0.0, %v104
    %v109 = vsub.f32 0.0, %v105
    %v110 = vsub.f32 0.0, %v106
    %v111 = vsub.f32 0.0, %v107
    %v112 = vsub.f32 1.0, %v92
    %v113 = vsub.f32 1.0, %v93
    %v114 = vsub.f32 1.0, %v94
    %v115 = vsub.f32 1.0, %v95
    %v116 = vlog2.pop %v112
    %v117 = vmul.f32 %v116, 0.6931472
    %v118 = vlog2.pop %v113
    %v119 = vmul.f32 %v118, 0.6931472
    %v120 = vlog2.pop %v114
    %v121 = vmul.f32 %v120, 0.6931472
    %v122 = vlog2.pop %v115
    %v123 = vmul.f32 %v122, 0.6931472
    %v124 = vmax.f32 %v117, -100.0
    %v125 = vmax.f32 %v119, -100.0
    %v126 = vmax.f32 %v121, -100.0
    %v127 = vmax.f32 %v123, -100.0
    %v128 = vsub.f32 0.0, %v124
    %v129 = vsub.f32 0.0, %v125
    %v130 = vsub.f32 0.0, %v126
    %v131 = vsub.f32 0.0, %v127
    %v132 = vld [vmem:[#allocation5] sm:$0xff]
    %v133 = vld [vmem:[#allocation5 + $0x8] sm:$0xff]
    %v134 = vld [vmem:[#allocation5 + $0x10] sm:$0xff]
    %v135 = vld [vmem:[#allocation5 + $0x18] sm:$0xff]
    %vm136 = vcmp.gt.f32.partialorder %v132, 0.5
    %vm137 = vcmp.gt.f32.partialorder %v133, 0.5
    %vm138 = vcmp.gt.f32.partialorder %v134, 0.5
    %vm139 = vcmp.gt.f32.partialorder %v135, 0.5
    %v140 = vsel %vm136, 1, 0
    %v141 = vsel %vm137, 1, 0
    %v142 = vsel %vm138, 1, 0
    %v143 = vsel %vm139, 1, 0
    %v144 = vcvt.s32.f32 %v140
    %v145 = vcvt.s32.f32 %v141
    %v146 = vcvt.s32.f32 %v142
    %v147 = vcvt.s32.f32 %v143
    %v148 = vsub.f32 1.0, %v144
    %v149 = vsub.f32 1.0, %v145
    %v150 = vsub.f32 1.0, %v146
    %v151 = vsub.f32 1.0, %v147
    %v152 = vld [vmem:[#allocation7] sm:$0xff]
    %v153 = vld [vmem:[#allocation7 + $0x8] sm:$0xff]
    %v154 = vld [vmem:[#allocation7 + $0x10] sm:$0xff]
    %v155 = vld [vmem:[#allocation7 + $0x18] sm:$0xff]
    %vm156 = vcmp.gt.f32.partialorder %v152, 0.5
    %vm157 = vcmp.gt.f32.partialorder %v153, 0.5
    %vm158 = vcmp.gt.f32.partialorder %v154, 0.5
    %vm159 = vcmp.gt.f32.partialorder %v155, 0.5
    %v160 = vsel %vm156, 1, 0
    %v161 = vsel %vm157, 1, 0
    %v162 = vsel %vm158, 1, 0
    %v163 = vsel %vm159, 1, 0
    %v164 = vcvt.s32.f32 %v160
    %v165 = vcvt.s32.f32 %v161
    %v166 = vcvt.s32.f32 %v162
    %v167 = vcvt.s32.f32 %v163
    %v168 = vld [vmem:[%s5] sm:$0xf]
    %v169 = vld [vmem:[%s5 + $0x4] sm:$0xf]
    %v170 = vld [vmem:[%s5 + $0x8] sm:$0xf]
    %v171 = vld [vmem:[%s5 + $0xc] sm:$0xf]
    %172 = vmatprep.subr.mxu0 %v129
    %173 = vmatpush1.xpose.msra.mxu0 %v128
    %174 = vmatprep.subr.mxu0 0.0
    %175 = vmatpush1.xpose.msra.mxu0 0.0
    %176 = vmatprep.subr.mxu0 0.0
    %177 = vmatpush1.xpose.msra.mxu0 0.0
    %178 = vmatprep.subr.mxu0 0.0
    %179 = vmatpush1.xpose.msra.mxu0 0.0
    %180 = vmatprep.subr.mxu0 0.0
    %181 = vmatpush1.xpose.msra.mxu0 0.0
    %182 = vmatprep.subr.mxu0 0.0
    %183 = vmatpush1.xpose.msra.mxu0 0.0
    %184 = vmatprep.subr.mxu0 0.0
    %185 = vmatpush1.xpose.msra.mxu0 0.0
    %186 = vmatprep.subr.mxu0 0.0
    %187 = vmatpush1.xpose.msra.mxu0 0.0
    %188 = vmatprep.subr.mxu0 0.0
    %189 = vmatpush1.xpose.msra.mxu0 0.0
    %190 = vmatprep.subr.mxu0 0.0
    %191 = vmatpush1.xpose.msra.mxu0 0.0
    %192 = vmatprep.subr.mxu0 0.0
    %193 = vmatpush1.xpose.msra.mxu0 0.0
    %194 = vmatprep.subr.mxu0 0.0
    %195 = vmatpush1.xpose.msra.mxu0 0.0
    %196 = vmatprep.subr.mxu0 0.0
    %197 = vmatpush1.xpose.msra.mxu0 0.0
    %198 = vmatprep.subr.mxu0 0.0
    %199 = vmatpush1.xpose.msra.mxu0 0.0
    %200 = vmatprep.subr.mxu0 0.0
    %201 = vmatpush1.xpose.msra.mxu0 0.0
    %202 = vmatprep.subr.mxu0 0.0
    %203 = vmatpush1.xpose.msra.mxu0 0.0
    %204 = vmatprep.subr.mxu0 0.0
    %205 = vmatpush1.xpose.msra.mxu0 0.0
    %206 = vmatprep.subr.mxu0 0.0
    %207 = vmatpush1.xpose.msra.mxu0 0.0
    %208 = vmatprep.subr.mxu0 0.0
    %209 = vmatpush1.xpose.msra.mxu0 0.0
    %210 = vmatprep.subr.mxu0 0.0
    %211 = vmatpush1.xpose.msra.mxu0 0.0
    %212 = vmatprep.subr.mxu0 0.0
    %213 = vmatpush1.xpose.msra.mxu0 0.0
    %214 = vmatprep.subr.mxu0 0.0
    %215 = vmatpush1.xpose.msra.mxu0 0.0
    %216 = vmatprep.subr.mxu0 0.0
    %217 = vmatpush1.xpose.msra.mxu0 0.0
    %218 = vmatprep.subr.mxu0 0.0
    %219 = vmatpush1.xpose.msra.mxu0 0.0
    %220 = vmatprep.subr.mxu0 0.0
    %221 = vmatpush1.xpose.msra.mxu0 0.0
    %222 = vmatprep.subr.mxu0 0.0
    %223 = vmatpush1.xpose.msra.mxu0 0.0
    %224 = vmatprep.subr.mxu0 0.0
    %225 = vmatpush1.xpose.msra.mxu0 0.0
    %226 = vmatprep.subr.mxu0 0.0
    %227 = vmatpush1.xpose.msra.mxu0 0.0
    %228 = vmatprep.subr.mxu0 0.0
    %229 = vmatpush1.xpose.msra.mxu0 0.0
    %230 = vmatprep.subr.mxu0 0.0
    %231 = vmatpush1.xpose.msra.mxu0 0.0
    %232 = vmatprep.subr.mxu0 0.0
    %233 = vmatpush1.xpose.msra.mxu0 0.0
    %234 = vmatprep.subr.mxu0 0.0
    %235 = vmatpush1.xpose.msra.mxu0 0.0
    %236 = vmatprep.mubr.f32.mxu0 %v149
    %237 = vmatmul.mubr.f32.gmra.mrb[0].mxu0 %v148
    %v238 = vpop.f32.mrb[0].mxu0
    %v239 = vadd.f32 0.0, %v238
    %v240 = vpop.f32.mrb[0].mxu0
    %241 = vdwg.mxu0
    %242 = vmatprep.subr.mxu0 %v109
    %243 = vmatpush1.xpose.msra.mxu0 %v108
    %244 = vmatprep.subr.mxu0 0.0
    %245 = vmatpush1.xpose.msra.mxu0 0.0
    %246 = vmatprep.subr.mxu0 0.0
    %247 = vmatpush1.xpose.msra.mxu0 0.0
    %248 = vmatprep.subr.mxu0 0.0
    %249 = vmatpush1.xpose.msra.mxu0 0.0
    %250 = vmatprep.subr.mxu0 0.0
    %251 = vmatpush1.xpose.msra.mxu0 0.0
    %252 = vmatprep.subr.mxu0 0.0
    %253 = vmatpush1.xpose.msra.mxu0 0.0
    %254 = vmatprep.subr.mxu0 0.0
    %255 = vmatpush1.xpose.msra.mxu0 0.0
    %256 = vmatprep.subr.mxu0 0.0
    %257 = vmatpush1.xpose.msra.mxu0 0.0
    %258 = vmatprep.subr.mxu0 0.0
    %259 = vmatpush1.xpose.msra.mxu0 0.0
    %260 = vmatprep.subr.mxu0 0.0
    %261 = vmatpush1.xpose.msra.mxu0 0.0
    %262 = vmatprep.subr.mxu0 0.0
    %263 = vmatpush1.xpose.msra.mxu0 0.0
    %264 = vmatprep.subr.mxu0 0.0
    %265 = vmatpush1.xpose.msra.mxu0 0.0
    %266 = vmatprep.subr.mxu0 0.0
    %267 = vmatpush1.xpose.msra.mxu0 0.0
    %268 = vmatprep.subr.mxu0 0.0
    %269 = vmatpush1.xpose.msra.mxu0 0.0
    %270 = vmatprep.subr.mxu0 0.0
    %271 = vmatpush1.xpose.msra.mxu0 0.0
    %272 = vmatprep.subr.mxu0 0.0
    %273 = vmatpush1.xpose.msra.mxu0 0.0
    %274 = vmatprep.subr.mxu0 0.0
    %275 = vmatpush1.xpose.msra.mxu0 0.0
    %276 = vmatprep.subr.mxu0 0.0
    %277 = vmatpush1.xpose.msra.mxu0 0.0
    %278 = vmatprep.subr.mxu0 0.0
    %279 = vmatpush1.xpose.msra.mxu0 0.0
    %280 = vmatprep.subr.mxu0 0.0
    %281 = vmatpush1.xpose.msra.mxu0 0.0
    %282 = vmatprep.subr.mxu0 0.0
    %283 = vmatpush1.xpose.msra.mxu0 0.0
    %284 = vmatprep.subr.mxu0 0.0
    %285 = vmatpush1.xpose.msra.mxu0 0.0
    %286 = vmatprep.subr.mxu0 0.0
    %287 = vmatpush1.xpose.msra.mxu0 0.0
    %288 = vmatprep.subr.mxu0 0.0
    %289 = vmatpush1.xpose.msra.mxu0 0.0
    %290 = vmatprep.subr.mxu0 0.0
    %291 = vmatpush1.xpose.msra.mxu0 0.0
    %292 = vmatprep.subr.mxu0 0.0
    %293 = vmatpush1.xpose.msra.mxu0 0.0
    %294 = vmatprep.subr.mxu0 0.0
    %295 = vmatpush1.xpose.msra.mxu0 0.0
    %296 = vmatprep.subr.mxu0 0.0
    %297 = vmatpush1.xpose.msra.mxu0 0.0
    %298 = vmatprep.subr.mxu0 0.0
    %299 = vmatpush1.xpose.msra.mxu0 0.0
    %300 = vmatprep.subr.mxu0 0.0
    %301 = vmatpush1.xpose.msra.mxu0 0.0
    %302 = vmatprep.subr.mxu0 0.0
    %303 = vmatpush1.xpose.msra.mxu0 0.0
    %304 = vmatprep.subr.mxu0 0.0
    %305 = vmatpush1.xpose.msra.mxu0 0.0
    %306 = vmatprep.mubr.f32.mxu0 %v145
    %307 = vmatmul.mubr.f32.gmra.mrb[0].mxu0 %v144
    %v308 = vpop.f32.mrb[0].mxu0
    %v309 = vadd.f32 %v239, %v308
    %v310 = vpop.f32.mrb[0].mxu0
    %311 = vdwg.mxu0
    %v312 = vld [vmem:[#allocation8] sm:$0xf]
    %v313 = vld [vmem:[#allocation8 + $0x8] sm:$0xf]
    %v314 = vld [vmem:[#allocation10] ss:$4 sm:$0x3]
    %v316 = vlaneseq
    %v317 = vshrl.u32 %v316, 7
    %v318 = vsub.s32 0, %v317
    %v319 = vrot.slane %v314, %v318
    %v320 = vlaneseq
    %v321 = vshrl.u32 %v320, 7
    %v322 = vsub.s32 1, %v321
    %v323 = vrot.slane %v314, %v322
    %v326 = vsub.f32 %v312, %v319
    %v327 = vsub.f32 %v313, %v323
    %v328 = vmul.f32 %v326, %v326
    %v329 = vmul.f32 %v327, %v327
    %s330 = scalar_lea.vmem [#allocation8], 32
    %v331 = vld [vmem:[%s330] sm:$0xf]
    %v332 = vld [vmem:[%s330 + $0x8] sm:$0xf]
    %s333 = scalar_lea.vmem [#allocation10], 8
    %v334 = vld [vmem:[%s333] ss:$4 sm:$0x3]
    %v336 = vlaneseq
    %v337 = vshrl.u32 %v336, 7
    %v338 = vsub.s32 0, %v337
    %v339 = vrot.slane %v334, %v338
    %v340 = vlaneseq
    %v341 = vshrl.u32 %v340, 7
    %v342 = vsub.s32 1, %v341
    %v343 = vrot.slane %v334, %v342
    %v346 = vsub.f32 %v331, %v339
    %v347 = vsub.f32 %v332, %v343
    %v348 = vmul.f32 %v346, %v346
    %v349 = vmul.f32 %v347, %v347
    %v350 = vadd.f32 %v328, %v348
    %v351 = vadd.f32 %v329, %v349
    %s352 = scalar_lea.vmem [#allocation8], 64
    %v353 = vld [vmem:[%s352] sm:$0xf]
    %v354 = vld [vmem:[%s352 + $0x8] sm:$0xf]
    %s355 = scalar_lea.vmem [#allocation10], 16
    %v356 = vld [vmem:[%s355] ss:$4 sm:$0x3]
    %v358 = vlaneseq
    %v359 = vshrl.u32 %v358, 7
    %v360 = vsub.s32 0, %v359
    %v361 = vrot.slane %v356, %v360
    %v362 = vlaneseq
    %v363 = vshrl.u32 %v362, 7
    %v364 = vsub.s32 1, %v363
    %v365 = vrot.slane %v356, %v364
    %v368 = vsub.f32 %v353, %v361
    %v369 = vsub.f32 %v354, %v365
    %v370 = vmul.f32 %v368, %v368
    %v371 = vmul.f32 %v369, %v369
    %v372 = vadd.f32 %v350, %v370
    %v373 = vadd.f32 %v351, %v371
    %374 = vmatprep.subr.mxu0 %v373
    %375 = vmatpush1.xpose.msra.mxu0 %v372
    %376 = vmatprep.subr.mxu0 0.0
    %377 = vmatpush1.xpose.msra.mxu0 0.0
    %378 = vmatprep.subr.mxu0 0.0
    %379 = vmatpush1.xpose.msra.mxu0 0.0
    %380 = vmatprep.subr.mxu0 0.0
    %381 = vmatpush1.xpose.msra.mxu0 0.0
    %382 = vmatprep.subr.mxu0 0.0
    %383 = vmatpush1.xpose.msra.mxu0 0.0
    %384 = vmatprep.subr.mxu0 0.0
    %385 = vmatpush1.xpose.msra.mxu0 0.0
    %386 = vmatprep.subr.mxu0 0.0
    %387 = vmatpush1.xpose.msra.mxu0 0.0
    %388 = vmatprep.subr.mxu0 0.0
    %389 = vmatpush1.xpose.msra.mxu0 0.0
    %390 = vmatprep.subr.mxu0 0.0
    %391 = vmatpush1.xpose.msra.mxu0 0.0
    %392 = vmatprep.subr.mxu0 0.0
    %393 = vmatpush1.xpose.msra.mxu0 0.0
    %394 = vmatprep.subr.mxu0 0.0
    %395 = vmatpush1.xpose.msra.mxu0 0.0
    %396 = vmatprep.subr.mxu0 0.0
    %397 = vmatpush1.xpose.msra.mxu0 0.0
    %398 = vmatprep.subr.mxu0 0.0
    %399 = vmatpush1.xpose.msra.mxu0 0.0
    %400 = vmatprep.subr.mxu0 0.0
    %401 = vmatpush1.xpose.msra.mxu0 0.0
    %402 = vmatprep.subr.mxu0 0.0
    %403 = vmatpush1.xpose.msra.mxu0 0.0
    %404 = vmatprep.subr.mxu0 0.0
    %405 = vmatpush1.xpose.msra.mxu0 0.0
    %406 = vmatprep.subr.mxu0 0.0
    %407 = vmatpush1.xpose.msra.mxu0 0.0
    %408 = vmatprep.subr.mxu0 0.0
    %409 = vmatpush1.xpose.msra.mxu0 0.0
    %410 = vmatprep.subr.mxu0 0.0
    %411 = vmatpush1.xpose.msra.mxu0 0.0
    %412 = vmatprep.subr.mxu0 0.0
    %413 = vmatpush1.xpose.msra.mxu0 0.0
    %414 = vmatprep.subr.mxu0 0.0
    %415 = vmatpush1.xpose.msra.mxu0 0.0
    %416 = vmatprep.subr.mxu0 0.0
    %417 = vmatpush1.xpose.msra.mxu0 0.0
    %418 = vmatprep.subr.mxu0 0.0
    %419 = vmatpush1.xpose.msra.mxu0 0.0
    %420 = vmatprep.subr.mxu0 0.0
    %421 = vmatpush1.xpose.msra.mxu0 0.0
    %422 = vmatprep.subr.mxu0 0.0
    %423 = vmatpush1.xpose.msra.mxu0 0.0
    %424 = vmatprep.subr.mxu0 0.0
    %425 = vmatpush1.xpose.msra.mxu0 0.0
    %426 = vmatprep.subr.mxu0 0.0
    %427 = vmatpush1.xpose.msra.mxu0 0.0
    %428 = vmatprep.subr.mxu0 0.0
    %429 = vmatpush1.xpose.msra.mxu0 0.0
    %430 = vmatprep.subr.mxu0 0.0
    %431 = vmatpush1.xpose.msra.mxu0 0.0
    %432 = vmatprep.subr.mxu0 0.0
    %433 = vmatpush1.xpose.msra.mxu0 0.0
    %434 = vmatprep.subr.mxu0 0.0
    %435 = vmatpush1.xpose.msra.mxu0 0.0
    %436 = vmatprep.subr.mxu0 0.0
    %437 = vmatpush1.xpose.msra.mxu0 0.0
    %438 = vmatprep.mubr.f32.mxu0 %v165
    %439 = vmatmul.mubr.f32.gmra.mrb[0].mxu0 %v164
    %v440 = vpop.f32.mrb[0].mxu0
    %v441 = vadd.f32 0.0, %v440
    %v442 = vpop.f32.mrb[0].mxu0
    %443 = vdwg.mxu0
    %v444 = vmul.f32 %v309, 0.00390625
    %v445 = vmul.f32 %v441, 0.1
    %v446 = vadd.f32 %v444, %v445
    %v447 = vmul.f32 %v168, %v446
    %vm448 = vcmask 27648
    %v449 = vsel %vm448, %v447, 0.0
    %450 = vadd.xlane.f32.xlu0 %v449
    %v451 = vpop.xlane.xlu0 %450
    %v452 = vrot.slane %v451, 4
    %v453 = vadd.f32 %v451, %v452
    %v454 = vrot.slane %v453, 2
    %v455 = vadd.f32 %v453, %v454
    %v456 = vrot.slane %v455, 1
    %v457 = vadd.f32 %v455, %v456
    %s458 = vtos %v457
    %v459 = vstv %s458
    %v460 = vadd.f32 %v459, 0.0
    %v463 = vrot.slane %v148, 4
    %v464 = vrot.slane %v149, 4
    %v469 = vrot.slane %v128, 4
    %v470 = vrot.slane %v129, 4
    %473 = vmatprep.subr.mxu0 %v470
    %474 = vmatpush1.xpose.msra.mxu0 %v469
    %475 = vmatprep.subr.mxu0 0.0
    %476 = vmatpush1.xpose.msra.mxu0 0.0
    %477 = vmatprep.subr.mxu0 0.0
    %478 = vmatpush1.xpose.msra.mxu0 0.0
    %479 = vmatprep.subr.mxu0 0.0
    %480 = vmatpush1.xpose.msra.mxu0 0.0
    %481 = vmatprep.subr.mxu0 0.0
    %482 = vmatpush1.xpose.msra.mxu0 0.0
    %483 = vmatprep.subr.mxu0 0.0
    %484 = vmatpush1.xpose.msra.mxu0 0.0
    %485 = vmatprep.subr.mxu0 0.0
    %486 = vmatpush1.xpose.msra.mxu0 0.0
    %487 = vmatprep.subr.mxu0 0.0
    %488 = vmatpush1.xpose.msra.mxu0 0.0
    %489 = vmatprep.subr.mxu0 0.0
    %490 = vmatpush1.xpose.msra.mxu0 0.0
    %491 = vmatprep.subr.mxu0 0.0
    %492 = vmatpush1.xpose.msra.mxu0 0.0
    %493 = vmatprep.subr.mxu0 0.0
    %494 = vmatpush1.xpose.msra.mxu0 0.0
    %495 = vmatprep.subr.mxu0 0.0
    %496 = vmatpush1.xpose.msra.mxu0 0.0
    %497 = vmatprep.subr.mxu0 0.0
    %498 = vmatpush1.xpose.msra.mxu0 0.0
    %499 = vmatprep.subr.mxu0 0.0
    %500 = vmatpush1.xpose.msra.mxu0 0.0
    %501 = vmatprep.subr.mxu0 0.0
    %502 = vmatpush1.xpose.msra.mxu0 0.0
    %503 = vmatprep.subr.mxu0 0.0
    %504 = vmatpush1.xpose.msra.mxu0 0.0
    %505 = vmatprep.subr.mxu0 0.0
    %506 = vmatpush1.xpose.msra.mxu0 0.0
    %507 = vmatprep.subr.mxu0 0.0
    %508 = vmatpush1.xpose.msra.mxu0 0.0
    %509 = vmatprep.subr.mxu0 0.0
    %510 = vmatpush1.xpose.msra.mxu0 0.0
    %511 = vmatprep.subr.mxu0 0.0
    %512 = vmatpush1.xpose.msra.mxu0 0.0
    %513 = vmatprep.subr.mxu0 0.0
    %514 = vmatpush1.xpose.msra.mxu0 0.0
    %515 = vmatprep.subr.mxu0 0.0
    %516 = vmatpush1.xpose.msra.mxu0 0.0
    %517 = vmatprep.subr.mxu0 0.0
    %518 = vmatpush1.xpose.msra.mxu0 0.0
    %519 = vmatprep.subr.mxu0 0.0
    %520 = vmatpush1.xpose.msra.mxu0 0.0
    %521 = vmatprep.subr.mxu0 0.0
    %522 = vmatpush1.xpose.msra.mxu0 0.0
    %523 = vmatprep.subr.mxu0 0.0
    %524 = vmatpush1.xpose.msra.mxu0 0.0
    %525 = vmatprep.subr.mxu0 0.0
    %526 = vmatpush1.xpose.msra.mxu0 0.0
    %527 = vmatprep.subr.mxu0 0.0
    %528 = vmatpush1.xpose.msra.mxu0 0.0
    %529 = vmatprep.subr.mxu0 0.0
    %530 = vmatpush1.xpose.msra.mxu0 0.0
    %531 = vmatprep.subr.mxu0 0.0
    %532 = vmatpush1.xpose.msra.mxu0 0.0
    %533 = vmatprep.subr.mxu0 0.0
    %534 = vmatpush1.xpose.msra.mxu0 0.0
    %535 = vmatprep.subr.mxu0 0.0
    %536 = vmatpush1.xpose.msra.mxu0 0.0
    %537 = vmatprep.mubr.f32.mxu0 %v464
    %538 = vmatmul.mubr.f32.gmra.mrb[0].mxu0 %v463
    %v539 = vpop.f32.mrb[0].mxu0
    %v540 = vadd.f32 0.0, %v539
    %v541 = vpop.f32.mrb[0].mxu0
    %542 = vdwg.mxu0
    %v545 = vrot.slane %v144, 4
    %v546 = vrot.slane %v145, 4
    %v551 = vrot.slane %v108, 4
    %v552 = vrot.slane %v109, 4
    %555 = vmatprep.subr.mxu0 %v552
    %556 = vmatpush1.xpose.msra.mxu0 %v551
    %557 = vmatprep.subr.mxu0 0.0
    %558 = vmatpush1.xpose.msra.mxu0 0.0
    %559 = vmatprep.subr.mxu0 0.0
    %560 = vmatpush1.xpose.msra.mxu0 0.0
    %561 = vmatprep.subr.mxu0 0.0
    %562 = vmatpush1.xpose.msra.mxu0 0.0
    %563 = vmatprep.subr.mxu0 0.0
    %564 = vmatpush1.xpose.msra.mxu0 0.0
    %565 = vmatprep.subr.mxu0 0.0
    %566 = vmatpush1.xpose.msra.mxu0 0.0
    %567 = vmatprep.subr.mxu0 0.0
    %568 = vmatpush1.xpose.msra.mxu0 0.0
    %569 = vmatprep.subr.mxu0 0.0
    %570 = vmatpush1.xpose.msra.mxu0 0.0
    %571 = vmatprep.subr.mxu0 0.0
    %572 = vmatpush1.xpose.msra.mxu0 0.0
    %573 = vmatprep.subr.mxu0 0.0
    %574 = vmatpush1.xpose.msra.mxu0 0.0
    %575 = vmatprep.subr.mxu0 0.0
    %576 = vmatpush1.xpose.msra.mxu0 0.0
    %577 = vmatprep.subr.mxu0 0.0
    %578 = vmatpush1.xpose.msra.mxu0 0.0
    %579 = vmatprep.subr.mxu0 0.0
    %580 = vmatpush1.xpose.msra.mxu0 0.0
    %581 = vmatprep.subr.mxu0 0.0
    %582 = vmatpush1.xpose.msra.mxu0 0.0
    %583 = vmatprep.subr.mxu0 0.0
    %584 = vmatpush1.xpose.msra.mxu0 0.0
    %585 = vmatprep.subr.mxu0 0.0
    %586 = vmatpush1.xpose.msra.mxu0 0.0
    %587 = vmatprep.subr.mxu0 0.0
    %588 = vmatpush1.xpose.msra.mxu0 0.0
    %589 = vmatprep.subr.mxu0 0.0
    %590 = vmatpush1.xpose.msra.mxu0 0.0
    %591 = vmatprep.subr.mxu0 0.0
    %592 = vmatpush1.xpose.msra.mxu0 0.0
    %593 = vmatprep.subr.mxu0 0.0
    %594 = vmatpush1.xpose.msra.mxu0 0.0
    %595 = vmatprep.subr.mxu0 0.0
    %596 = vmatpush1.xpose.msra.mxu0 0.0
    %597 = vmatprep.subr.mxu0 0.0
    %598 = vmatpush1.xpose.msra.mxu0 0.0
    %599 = vmatprep.subr.mxu0 0.0
    %600 = vmatpush1.xpose.msra.mxu0 0.0
    %601 = vmatprep.subr.mxu0 0.0
    %602 = vmatpush1.xpose.msra.mxu0 0.0
    %603 = vmatprep.subr.mxu0 0.0
    %604 = vmatpush1.xpose.msra.mxu0 0.0
    %605 = vmatprep.subr.mxu0 0.0
    %606 = vmatpush1.xpose.msra.mxu0 0.0
    %607 = vmatprep.subr.mxu0 0.0
    %608 = vmatpush1.xpose.msra.mxu0 0.0
    %609 = vmatprep.subr.mxu0 0.0
    %610 = vmatpush1.xpose.msra.mxu0 0.0
    %611 = vmatprep.subr.mxu0 0.0
    %612 = vmatpush1.xpose.msra.mxu0 0.0
    %613 = vmatprep.subr.mxu0 0.0
    %614 = vmatpush1.xpose.msra.mxu0 0.0
    %615 = vmatprep.subr.mxu0 0.0
    %616 = vmatpush1.xpose.msra.mxu0 0.0
    %617 = vmatprep.subr.mxu0 0.0
    %618 = vmatpush1.xpose.msra.mxu0 0.0
    %619 = vmatprep.mubr.f32.mxu0 %v546
    %620 = vmatmul.mubr.f32.gmra.mrb[0].mxu0 %v545
    %v621 = vpop.f32.mrb[0].mxu0
    %v622 = vadd.f32 %v540, %v621
    %v623 = vpop.f32.mrb[0].mxu0
    %624 = vdwg.mxu0
    %v625 = vld [vmem:[#allocation8] sm:$0xf0]
    %v626 = vld [vmem:[#allocation8 + $0x8] sm:$0xf0]
    %s627 = scalar_lea.vmem [#allocation10], 1
    %v628 = vld [vmem:[%s627] ss:$4 sm:$0x3]
    %v630 = vlaneseq
    %v631 = vshrl.u32 %v630, 7
    %v632 = vsub.s32 0, %v631
    %v633 = vrot.slane %v628, %v632
    %v634 = vlaneseq
    %v635 = vshrl.u32 %v634, 7
    %v636 = vsub.s32 1, %v635
    %v637 = vrot.slane %v628, %v636
    %v640 = vsub.f32 %v625, %v633
    %v641 = vsub.f32 %v626, %v637
    %v642 = vmul.f32 %v640, %v640
    %v643 = vmul.f32 %v641, %v641
    %v644 = vld [vmem:[%s330] sm:$0xf0]
    %v645 = vld [vmem:[%s330 + $0x8] sm:$0xf0]
    %s646 = scalar_lea.vmem %s333, 1 [#allocation10]
    %v647 = vld [vmem:[%s646] ss:$4 sm:$0x3]
    %v649 = vlaneseq
    %v650 = vshrl.u32 %v649, 7
    %v651 = vsub.s32 0, %v650
    %v652 = vrot.slane %v647, %v651
    %v653 = vlaneseq
    %v654 = vshrl.u32 %v653, 7
    %v655 = vsub.s32 1, %v654
    %v656 = vrot.slane %v647, %v655
    %v659 = vsub.f32 %v644, %v652
    %v660 = vsub.f32 %v645, %v656
    %v661 = vmul.f32 %v659, %v659
    %v662 = vmul.f32 %v660, %v660
    %v663 = vadd.f32 %v642, %v661
    %v664 = vadd.f32 %v643, %v662
    %v665 = vld [vmem:[%s352] sm:$0xf0]
    %v666 = vld [vmem:[%s352 + $0x8] sm:$0xf0]
    %s667 = scalar_lea.vmem %s355, 1 [#allocation10]
    %v668 = vld [vmem:[%s667] ss:$4 sm:$0x3]
    %v670 = vlaneseq
    %v671 = vshrl.u32 %v670, 7
    %v672 = vsub.s32 0, %v671
    %v673 = vrot.slane %v668, %v672
    %v674 = vlaneseq
    %v675 = vshrl.u32 %v674, 7
    %v676 = vsub.s32 1, %v675
    %v677 = vrot.slane %v668, %v676
    %v680 = vsub.f32 %v665, %v673
    %v681 = vsub.f32 %v666, %v677
    %v682 = vmul.f32 %v680, %v680
    %v683 = vmul.f32 %v681, %v681
    %v684 = vadd.f32 %v663, %v682
    %v685 = vadd.f32 %v664, %v683
    %v688 = vrot.slane %v164, 4
    %v689 = vrot.slane %v165, 4
    %v694 = vrot.slane %v684, 4
    %v695 = vrot.slane %v685, 4
    %698 = vmatprep.subr.mxu0 %v695
    %699 = vmatpush1.xpose.msra.mxu0 %v694
    %700 = vmatprep.subr.mxu0 0.0
    %701 = vmatpush1.xpose.msra.mxu0 0.0
    %702 = vmatprep.subr.mxu0 0.0
    %703 = vmatpush1.xpose.msra.mxu0 0.0
    %704 = vmatprep.subr.mxu0 0.0
    %705 = vmatpush1.xpose.msra.mxu0 0.0
    %706 = vmatprep.subr.mxu0 0.0
    %707 = vmatpush1.xpose.msra.mxu0 0.0
    %708 = vmatprep.subr.mxu0 0.0
    %709 = vmatpush1.xpose.msra.mxu0 0.0
    %710 = vmatprep.subr.mxu0 0.0
    %711 = vmatpush1.xpose.msra.mxu0 0.0
    %712 = vmatprep.subr.mxu0 0.0
    %713 = vmatpush1.xpose.msra.mxu0 0.0
    %714 = vmatprep.subr.mxu0 0.0
    %715 = vmatpush1.xpose.msra.mxu0 0.0
    %716 = vmatprep.subr.mxu0 0.0
    %717 = vmatpush1.xpose.msra.mxu0 0.0
    %718 = vmatprep.subr.mxu0 0.0
    %719 = vmatpush1.xpose.msra.mxu0 0.0
    %720 = vmatprep.subr.mxu0 0.0
    %721 = vmatpush1.xpose.msra.mxu0 0.0
    %722 = vmatprep.subr.mxu0 0.0
    %723 = vmatpush1.xpose.msra.mxu0 0.0
    %724 = vmatprep.subr.mxu0 0.0
    %725 = vmatpush1.xpose.msra.mxu0 0.0
    %726 = vmatprep.subr.mxu0 0.0
    %727 = vmatpush1.xpose.msra.mxu0 0.0
    %728 = vmatprep.subr.mxu0 0.0
    %729 = vmatpush1.xpose.msra.mxu0 0.0
    %730 = vmatprep.subr.mxu0 0.0
    %731 = vmatpush1.xpose.msra.mxu0 0.0
    %732 = vmatprep.subr.mxu0 0.0
    %733 = vmatpush1.xpose.msra.mxu0 0.0
    %734 = vmatprep.subr.mxu0 0.0
    %735 = vmatpush1.xpose.msra.mxu0 0.0
    %736 = vmatprep.subr.mxu0 0.0
    %737 = vmatpush1.xpose.msra.mxu0 0.0
    %738 = vmatprep.subr.mxu0 0.0
    %739 = vmatpush1.xpose.msra.mxu0 0.0
    %740 = vmatprep.subr.mxu0 0.0
    %741 = vmatpush1.xpose.msra.mxu0 0.0
    %742 = vmatprep.subr.mxu0 0.0
    %743 = vmatpush1.xpose.msra.mxu0 0.0
    %744 = vmatprep.subr.mxu0 0.0
    %745 = vmatpush1.xpose.msra.mxu0 0.0
    %746 = vmatprep.subr.mxu0 0.0
    %747 = vmatpush1.xpose.msra.mxu0 0.0
    %748 = vmatprep.subr.mxu0 0.0
    %749 = vmatpush1.xpose.msra.mxu0 0.0
    %750 = vmatprep.subr.mxu0 0.0
    %751 = vmatpush1.xpose.msra.mxu0 0.0
    %752 = vmatprep.subr.mxu0 0.0
    %753 = vmatpush1.xpose.msra.mxu0 0.0
    %754 = vmatprep.subr.mxu0 0.0
    %755 = vmatpush1.xpose.msra.mxu0 0.0
    %756 = vmatprep.subr.mxu0 0.0
    %757 = vmatpush1.xpose.msra.mxu0 0.0
    %758 = vmatprep.subr.mxu0 0.0
    %759 = vmatpush1.xpose.msra.mxu0 0.0
    %760 = vmatprep.subr.mxu0 0.0
    %761 = vmatpush1.xpose.msra.mxu0 0.0
    %762 = vmatprep.mubr.f32.mxu0 %v689
    %763 = vmatmul.mubr.f32.gmra.mrb[0].mxu0 %v688
    %v764 = vpop.f32.mrb[0].mxu0
    %v765 = vadd.f32 0.0, %v764
    %v766 = vpop.f32.mrb[0].mxu0
    %767 = vdwg.mxu0
    %v768 = vmul.f32 %v622, 0.00390625
    %v769 = vmul.f32 %v765, 0.1
    %v770 = vadd.f32 %v768, %v769
    %v771 = vmul.f32 %v169, %v770
    %v772 = vsel %vm448, %v771, 0.0
    %773 = vadd.xlane.f32.xlu0 %v772
    %v774 = vpop.xlane.xlu0 %773
    %v775 = vrot.slane %v774, 4
    %v776 = vadd.f32 %v774, %v775
    %v777 = vrot.slane %v776, 2
    %v778 = vadd.f32 %v776, %v777
    %v779 = vrot.slane %v778, 1
    %v780 = vadd.f32 %v778, %v779
    %s781 = vtos %v780
    %v782 = vstv %s781
    %v783 = vadd.f32 %v460, %v782
    %784 = vmatprep.subr.mxu0 %v131
    %785 = vmatpush1.xpose.msra.mxu0 %v130
    %786 = vmatprep.subr.mxu0 0.0
    %787 = vmatpush1.xpose.msra.mxu0 0.0
    %788 = vmatprep.subr.mxu0 0.0
    %789 = vmatpush1.xpose.msra.mxu0 0.0
    %790 = vmatprep.subr.mxu0 0.0
    %791 = vmatpush1.xpose.msra.mxu0 0.0
    %792 = vmatprep.subr.mxu0 0.0
    %793 = vmatpush1.xpose.msra.mxu0 0.0
    %794 = vmatprep.subr.mxu0 0.0
    %795 = vmatpush1.xpose.msra.mxu0 0.0
    %796 = vmatprep.subr.mxu0 0.0
    %797 = vmatpush1.xpose.msra.mxu0 0.0
    %798 = vmatprep.subr.mxu0 0.0
    %799 = vmatpush1.xpose.msra.mxu0 0.0
    %800 = vmatprep.subr.mxu0 0.0
    %801 = vmatpush1.xpose.msra.mxu0 0.0
    %802 = vmatprep.subr.mxu0 0.0
    %803 = vmatpush1.xpose.msra.mxu0 0.0
    %804 = vmatprep.subr.mxu0 0.0
    %805 = vmatpush1.xpose.msra.mxu0 0.0
    %806 = vmatprep.subr.mxu0 0.0
    %807 = vmatpush1.xpose.msra.mxu0 0.0
    %808 = vmatprep.subr.mxu0 0.0
    %809 = vmatpush1.xpose.msra.mxu0 0.0
    %810 = vmatprep.subr.mxu0 0.0
    %811 = vmatpush1.xpose.msra.mxu0 0.0
    %812 = vmatprep.subr.mxu0 0.0
    %813 = vmatpush1.xpose.msra.mxu0 0.0
    %814 = vmatprep.subr.mxu0 0.0
    %815 = vmatpush1.xpose.msra.mxu0 0.0
    %816 = vmatprep.subr.mxu0 0.0
    %817 = vmatpush1.xpose.msra.mxu0 0.0
    %818 = vmatprep.subr.mxu0 0.0
    %819 = vmatpush1.xpose.msra.mxu0 0.0
    %820 = vmatprep.subr.mxu0 0.0
    %821 = vmatpush1.xpose.msra.mxu0 0.0
    %822 = vmatprep.subr.mxu0 0.0
    %823 = vmatpush1.xpose.msra.mxu0 0.0
    %824 = vmatprep.subr.mxu0 0.0
    %825 = vmatpush1.xpose.msra.mxu0 0.0
    %826 = vmatprep.subr.mxu0 0.0
    %827 = vmatpush1.xpose.msra.mxu0 0.0
    %828 = vmatprep.subr.mxu0 0.0
    %829 = vmatpush1.xpose.msra.mxu0 0.0
    %830 = vmatprep.subr.mxu0 0.0
    %831 = vmatpush1.xpose.msra.mxu0 0.0
    %832 = vmatprep.subr.mxu0 0.0
    %833 = vmatpush1.xpose.msra.mxu0 0.0
    %834 = vmatprep.subr.mxu0 0.0
    %835 = vmatpush1.xpose.msra.mxu0 0.0
    %836 = vmatprep.subr.mxu0 0.0
    %837 = vmatpush1.xpose.msra.mxu0 0.0
    %838 = vmatprep.subr.mxu0 0.0
    %839 = vmatpush1.xpose.msra.mxu0 0.0
    %840 = vmatprep.subr.mxu0 0.0
    %841 = vmatpush1.xpose.msra.mxu0 0.0
    %842 = vmatprep.subr.mxu0 0.0
    %843 = vmatpush1.xpose.msra.mxu0 0.0
    %844 = vmatprep.subr.mxu0 0.0
    %845 = vmatpush1.xpose.msra.mxu0 0.0
    %846 = vmatprep.subr.mxu0 0.0
    %847 = vmatpush1.xpose.msra.mxu0 0.0
    %848 = vmatprep.mubr.f32.mxu0 %v151
    %849 = vmatmul.mubr.f32.gmra.mrb[0].mxu0 %v150
    %v850 = vpop.f32.mrb[0].mxu0
    %v851 = vadd.f32 0.0, %v850
    %v852 = vpop.f32.mrb[0].mxu0
    %853 = vdwg.mxu0
    %854 = vmatprep.subr.mxu0 %v111
    %855 = vmatpush1.xpose.msra.mxu0 %v110
    %856 = vmatprep.subr.mxu0 0.0
    %857 = vmatpush1.xpose.msra.mxu0 0.0
    %858 = vmatprep.subr.mxu0 0.0
    %859 = vmatpush1.xpose.msra.mxu0 0.0
    %860 = vmatprep.subr.mxu0 0.0
    %861 = vmatpush1.xpose.msra.mxu0 0.0
    %862 = vmatprep.subr.mxu0 0.0
    %863 = vmatpush1.xpose.msra.mxu0 0.0
    %864 = vmatprep.subr.mxu0 0.0
    %865 = vmatpush1.xpose.msra.mxu0 0.0
    %866 = vmatprep.subr.mxu0 0.0
    %867 = vmatpush1.xpose.msra.mxu0 0.0
    %868 = vmatprep.subr.mxu0 0.0
    %869 = vmatpush1.xpose.msra.mxu0 0.0
    %870 = vmatprep.subr.mxu0 0.0
    %871 = vmatpush1.xpose.msra.mxu0 0.0
    %872 = vmatprep.subr.mxu0 0.0
    %873 = vmatpush1.xpose.msra.mxu0 0.0
    %874 = vmatprep.subr.mxu0 0.0
    %875 = vmatpush1.xpose.msra.mxu0 0.0
    %876 = vmatprep.subr.mxu0 0.0
    %877 = vmatpush1.xpose.msra.mxu0 0.0
    %878 = vmatprep.subr.mxu0 0.0
    %879 = vmatpush1.xpose.msra.mxu0 0.0
    %880 = vmatprep.subr.mxu0 0.0
    %881 = vmatpush1.xpose.msra.mxu0 0.0
    %882 = vmatprep.subr.mxu0 0.0
    %883 = vmatpush1.xpose.msra.mxu0 0.0
    %884 = vmatprep.subr.mxu0 0.0
    %885 = vmatpush1.xpose.msra.mxu0 0.0
    %886 = vmatprep.subr.mxu0 0.0
    %887 = vmatpush1.xpose.msra.mxu0 0.0
    %888 = vmatprep.subr.mxu0 0.0
    %889 = vmatpush1.xpose.msra.mxu0 0.0
    %890 = vmatprep.subr.mxu0 0.0
    %891 = vmatpush1.xpose.msra.mxu0 0.0
    %892 = vmatprep.subr.mxu0 0.0
    %893 = vmatpush1.xpose.msra.mxu0 0.0
    %894 = vmatprep.subr.mxu0 0.0
    %895 = vmatpush1.xpose.msra.mxu0 0.0
    %896 = vmatprep.subr.mxu0 0.0
    %897 = vmatpush1.xpose.msra.mxu0 0.0
    %898 = vmatprep.subr.mxu0 0.0
    %899 = vmatpush1.xpose.msra.mxu0 0.0
    %900 = vmatprep.subr.mxu0 0.0
    %901 = vmatpush1.xpose.msra.mxu0 0.0
    %902 = vmatprep.subr.mxu0 0.0
    %903 = vmatpush1.xpose.msra.mxu0 0.0
    %904 = vmatprep.subr.mxu0 0.0
    %905 = vmatpush1.xpose.msra.mxu0 0.0
    %906 = vmatprep.subr.mxu0 0.0
    %907 = vmatpush1.xpose.msra.mxu0 0.0
    %908 = vmatprep.subr.mxu0 0.0
    %909 = vmatpush1.xpose.msra.mxu0 0.0
    %910 = vmatprep.subr.mxu0 0.0
    %911 = vmatpush1.xpose.msra.mxu0 0.0
    %912 = vmatprep.subr.mxu0 0.0
    %913 = vmatpush1.xpose.msra.mxu0 0.0
    %914 = vmatprep.subr.mxu0 0.0
    %915 = vmatpush1.xpose.msra.mxu0 0.0
    %916 = vmatprep.subr.mxu0 0.0
    %917 = vmatpush1.xpose.msra.mxu0 0.0
    %918 = vmatprep.mubr.f32.mxu0 %v147
    %919 = vmatmul.mubr.f32.gmra.mrb[0].mxu0 %v146
    %v920 = vpop.f32.mrb[0].mxu0
    %v921 = vadd.f32 %v851, %v920
    %v922 = vpop.f32.mrb[0].mxu0
    %923 = vdwg.mxu0
    %v924 = vld [vmem:[#allocation8 + $0x10] sm:$0xf]
    %v925 = vld [vmem:[#allocation8 + $0x18] sm:$0xf]
    %s926 = scalar_lea.vmem [#allocation10], 2
    %v927 = vld [vmem:[%s926] ss:$4 sm:$0x3]
    %v929 = vlaneseq
    %v930 = vshrl.u32 %v929, 7
    %v931 = vsub.s32 0, %v930
    %v932 = vrot.slane %v927, %v931
    %v933 = vlaneseq
    %v934 = vshrl.u32 %v933, 7
    %v935 = vsub.s32 1, %v934
    %v936 = vrot.slane %v927, %v935
    %v939 = vsub.f32 %v924, %v932
    %v940 = vsub.f32 %v925, %v936
    %v941 = vmul.f32 %v939, %v939
    %v942 = vmul.f32 %v940, %v940
    %v943 = vld [vmem:[%s330 + $0x10] sm:$0xf]
    %v944 = vld [vmem:[%s330 + $0x18] sm:$0xf]
    %s945 = scalar_lea.vmem %s333, 2 [#allocation10]
    %v946 = vld [vmem:[%s945] ss:$4 sm:$0x3]
    %v948 = vlaneseq
    %v949 = vshrl.u32 %v948, 7
    %v950 = vsub.s32 0, %v949
    %v951 = vrot.slane %v946, %v950
    %v952 = vlaneseq
    %v953 = vshrl.u32 %v952, 7
    %v954 = vsub.s32 1, %v953
    %v955 = vrot.slane %v946, %v954
    %v958 = vsub.f32 %v943, %v951
    %v959 = vsub.f32 %v944, %v955
    %v960 = vmul.f32 %v958, %v958
    %v961 = vmul.f32 %v959, %v959
    %v962 = vadd.f32 %v941, %v960
    %v963 = vadd.f32 %v942, %v961
    %v964 = vld [vmem:[%s352 + $0x10] sm:$0xf]
    %v965 = vld [vmem:[%s352 + $0x18] sm:$0xf]
    %s966 = scalar_lea.vmem %s355, 2 [#allocation10]
    %v967 = vld [vmem:[%s966] ss:$4 sm:$0x3]
    %v969 = vlaneseq
    %v970 = vshrl.u32 %v969, 7
    %v971 = vsub.s32 0, %v970
    %v972 = vrot.slane %v967, %v971
    %v973 = vlaneseq
    %v974 = vshrl.u32 %v973, 7
    %v975 = vsub.s32 1, %v974
    %v976 = vrot.slane %v967, %v975
    %v979 = vsub.f32 %v964, %v972
    %v980 = vsub.f32 %v965, %v976
    %v981 = vmul.f32 %v979, %v979
    %v982 = vmul.f32 %v980, %v980
    %v983 = vadd.f32 %v962, %v981
    %v984 = vadd.f32 %v963, %v982
    %985 = vmatprep.subr.mxu0 %v984
    %986 = vmatpush1.xpose.msra.mxu0 %v983
    %987 = vmatprep.subr.mxu0 0.0
    %988 = vmatpush1.xpose.msra.mxu0 0.0
    %989 = vmatprep.subr.mxu0 0.0
    %990 = vmatpush1.xpose.msra.mxu0 0.0
    %991 = vmatprep.subr.mxu0 0.0
    %992 = vmatpush1.xpose.msra.mxu0 0.0
    %993 = vmatprep.subr.mxu0 0.0
    %994 = vmatpush1.xpose.msra.mxu0 0.0
    %995 = vmatprep.subr.mxu0 0.0
    %996 = vmatpush1.xpose.msra.mxu0 0.0
    %997 = vmatprep.subr.mxu0 0.0
    %998 = vmatpush1.xpose.msra.mxu0 0.0
    %999 = vmatprep.subr.mxu0 0.0
    %1000 = vmatpush1.xpose.msra.mxu0 0.0
    %1001 = vmatprep.subr.mxu0 0.0
    %1002 = vmatpush1.xpose.msra.mxu0 0.0
    %1003 = vmatprep.subr.mxu0 0.0
    %1004 = vmatpush1.xpose.msra.mxu0 0.0
    %1005 = vmatprep.subr.mxu0 0.0
    %1006 = vmatpush1.xpose.msra.mxu0 0.0
    %1007 = vmatprep.subr.mxu0 0.0
    %1008 = vmatpush1.xpose.msra.mxu0 0.0
    %1009 = vmatprep.subr.mxu0 0.0
    %1010 = vmatpush1.xpose.msra.mxu0 0.0
    %1011 = vmatprep.subr.mxu0 0.0
    %1012 = vmatpush1.xpose.msra.mxu0 0.0
    %1013 = vmatprep.subr.mxu0 0.0
    %1014 = vmatpush1.xpose.msra.mxu0 0.0
    %1015 = vmatprep.subr.mxu0 0.0
    %1016 = vmatpush1.xpose.msra.mxu0 0.0
    %1017 = vmatprep.subr.mxu0 0.0
    %1018 = vmatpush1.xpose.msra.mxu0 0.0
    %1019 = vmatprep.subr.mxu0 0.0
    %1020 = vmatpush1.xpose.msra.mxu0 0.0
    %1021 = vmatprep.subr.mxu0 0.0
    %1022 = vmatpush1.xpose.msra.mxu0 0.0
    %1023 = vmatprep.subr.mxu0 0.0
    %1024 = vmatpush1.xpose.msra.mxu0 0.0
    %1025 = vmatprep.subr.mxu0 0.0
    %1026 = vmatpush1.xpose.msra.mxu0 0.0
    %1027 = vmatprep.subr.mxu0 0.0
    %1028 = vmatpush1.xpose.msra.mxu0 0.0
    %1029 = vmatprep.subr.mxu0 0.0
    %1030 = vmatpush1.xpose.msra.mxu0 0.0
    %1031 = vmatprep.subr.mxu0 0.0
    %1032 = vmatpush1.xpose.msra.mxu0 0.0
    %1033 = vmatprep.subr.mxu0 0.0
    %1034 = vmatpush1.xpose.msra.mxu0 0.0
    %1035 = vmatprep.subr.mxu0 0.0
    %1036 = vmatpush1.xpose.msra.mxu0 0.0
    %1037 = vmatprep.subr.mxu0 0.0
    %1038 = vmatpush1.xpose.msra.mxu0 0.0
    %1039 = vmatprep.subr.mxu0 0.0
    %1040 = vmatpush1.xpose.msra.mxu0 0.0
    %1041 = vmatprep.subr.mxu0 0.0
    %1042 = vmatpush1.xpose.msra.mxu0 0.0
    %1043 = vmatprep.subr.mxu0 0.0
    %1044 = vmatpush1.xpose.msra.mxu0 0.0
    %1045 = vmatprep.subr.mxu0 0.0
    %1046 = vmatpush1.xpose.msra.mxu0 0.0
    %1047 = vmatprep.subr.mxu0 0.0
    %1048 = vmatpush1.xpose.msra.mxu0 0.0
    %1049 = vmatprep.mubr.f32.mxu0 %v167
    %1050 = vmatmul.mubr.f32.gmra.mrb[0].mxu0 %v166
    %v1051 = vpop.f32.mrb[0].mxu0
    %v1052 = vadd.f32 0.0, %v1051
    %v1053 = vpop.f32.mrb[0].mxu0
    %1054 = vdwg.mxu0
    %v1055 = vmul.f32 %v921, 0.00390625
    %v1056 = vmul.f32 %v1052, 0.1
    %v1057 = vadd.f32 %v1055, %v1056
    %v1058 = vmul.f32 %v170, %v1057
    %v1059 = vsel %vm448, %v1058, 0.0
    %1060 = vadd.xlane.f32.xlu0 %v1059
    %v1061 = vpop.xlane.xlu0 %1060
    %v1062 = vrot.slane %v1061, 4
    %v1063 = vadd.f32 %v1061, %v1062
    %v1064 = vrot.slane %v1063, 2
    %v1065 = vadd.f32 %v1063, %v1064
    %v1066 = vrot.slane %v1065, 1
    %v1067 = vadd.f32 %v1065, %v1066
    %s1068 = vtos %v1067
    %v1069 = vstv %s1068
    %v1070 = vadd.f32 %v783, %v1069
    %v1073 = vrot.slane %v150, 4
    %v1074 = vrot.slane %v151, 4
    %v1079 = vrot.slane %v130, 4
    %v1080 = vrot.slane %v131, 4
    %1083 = vmatprep.subr.mxu0 %v1080
    %1084 = vmatpush1.xpose.msra.mxu0 %v1079
    %1085 = vmatprep.subr.mxu0 0.0
    %1086 = vmatpush1.xpose.msra.mxu0 0.0
    %1087 = vmatprep.subr.mxu0 0.0
    %1088 = vmatpush1.xpose.msra.mxu0 0.0
    %1089 = vmatprep.subr.mxu0 0.0
    %1090 = vmatpush1.xpose.msra.mxu0 0.0
    %1091 = vmatprep.subr.mxu0 0.0
    %1092 = vmatpush1.xpose.msra.mxu0 0.0
    %1093 = vmatprep.subr.mxu0 0.0
    %1094 = vmatpush1.xpose.msra.mxu0 0.0
    %1095 = vmatprep.subr.mxu0 0.0
    %1096 = vmatpush1.xpose.msra.mxu0 0.0
    %1097 = vmatprep.subr.mxu0 0.0
    %1098 = vmatpush1.xpose.msra.mxu0 0.0
    %1099 = vmatprep.subr.mxu0 0.0
    %1100 = vmatpush1.xpose.msra.mxu0 0.0
    %1101 = vmatprep.subr.mxu0 0.0
    %1102 = vmatpush1.xpose.msra.mxu0 0.0
    %1103 = vmatprep.subr.mxu0 0.0
    %1104 = vmatpush1.xpose.msra.mxu0 0.0
    %1105 = vmatprep.subr.mxu0 0.0
    %1106 = vmatpush1.xpose.msra.mxu0 0.0
    %1107 = vmatprep.subr.mxu0 0.0
    %1108 = vmatpush1.xpose.msra.mxu0 0.0
    %1109 = vmatprep.subr.mxu0 0.0
    %1110 = vmatpush1.xpose.msra.mxu0 0.0
    %1111 = vmatprep.subr.mxu0 0.0
    %1112 = vmatpush1.xpose.msra.mxu0 0.0
    %1113 = vmatprep.subr.mxu0 0.0
    %1114 = vmatpush1.xpose.msra.mxu0 0.0
    %1115 = vmatprep.subr.mxu0 0.0
    %1116 = vmatpush1.xpose.msra.mxu0 0.0
    %1117 = vmatprep.subr.mxu0 0.0
    %1118 = vmatpush1.xpose.msra.mxu0 0.0
    %1119 = vmatprep.subr.mxu0 0.0
    %1120 = vmatpush1.xpose.msra.mxu0 0.0
    %1121 = vmatprep.subr.mxu0 0.0
    %1122 = vmatpush1.xpose.msra.mxu0 0.0
    %1123 = vmatprep.subr.mxu0 0.0
    %1124 = vmatpush1.xpose.msra.mxu0 0.0
    %1125 = vmatprep.subr.mxu0 0.0
    %1126 = vmatpush1.xpose.msra.mxu0 0.0
    %1127 = vmatprep.subr.mxu0 0.0
    %1128 = vmatpush1.xpose.msra.mxu0 0.0
    %1129 = vmatprep.subr.mxu0 0.0
    %1130 = vmatpush1.xpose.msra.mxu0 0.0
    %1131 = vmatprep.subr.mxu0 0.0
    %1132 = vmatpush1.xpose.msra.mxu0 0.0
    %1133 = vmatprep.subr.mxu0 0.0
    %1134 = vmatpush1.xpose.msra.mxu0 0.0
    %1135 = vmatprep.subr.mxu0 0.0
    %1136 = vmatpush1.xpose.msra.mxu0 0.0
    %1137 = vmatprep.subr.mxu0 0.0
    %1138 = vmatpush1.xpose.msra.mxu0 0.0
    %1139 = vmatprep.subr.mxu0 0.0
    %1140 = vmatpush1.xpose.msra.mxu0 0.0
    %1141 = vmatprep.subr.mxu0 0.0
    %1142 = vmatpush1.xpose.msra.mxu0 0.0
    %1143 = vmatprep.subr.mxu0 0.0
    %1144 = vmatpush1.xpose.msra.mxu0 0.0
    %1145 = vmatprep.subr.mxu0 0.0
    %1146 = vmatpush1.xpose.msra.mxu0 0.0
    %1147 = vmatprep.mubr.f32.mxu0 %v1074
    %1148 = vmatmul.mubr.f32.gmra.mrb[0].mxu0 %v1073
    %v1149 = vpop.f32.mrb[0].mxu0
    %v1150 = vadd.f32 0.0, %v1149
    %v1151 = vpop.f32.mrb[0].mxu0
    %1152 = vdwg.mxu0
    %v1155 = vrot.slane %v146, 4
    %v1156 = vrot.slane %v147, 4
    %v1161 = vrot.slane %v110, 4
    %v1162 = vrot.slane %v111, 4
    %1165 = vmatprep.subr.mxu0 %v1162
    %1166 = vmatpush1.xpose.msra.mxu0 %v1161
    %1167 = vmatprep.subr.mxu0 0.0
    %1168 = vmatpush1.xpose.msra.mxu0 0.0
    %1169 = vmatprep.subr.mxu0 0.0
    %1170 = vmatpush1.xpose.msra.mxu0 0.0
    %1171 = vmatprep.subr.mxu0 0.0
    %1172 = vmatpush1.xpose.msra.mxu0 0.0
    %1173 = vmatprep.subr.mxu0 0.0
    %1174 = vmatpush1.xpose.msra.mxu0 0.0
    %1175 = vmatprep.subr.mxu0 0.0
    %1176 = vmatpush1.xpose.msra.mxu0 0.0
    %1177 = vmatprep.subr.mxu0 0.0
    %1178 = vmatpush1.xpose.msra.mxu0 0.0
    %1179 = vmatprep.subr.mxu0 0.0
    %1180 = vmatpush1.xpose.msra.mxu0 0.0
    %1181 = vmatprep.subr.mxu0 0.0
    %1182 = vmatpush1.xpose.msra.mxu0 0.0
    %1183 = vmatprep.subr.mxu0 0.0
    %1184 = vmatpush1.xpose.msra.mxu0 0.0
    %1185 = vmatprep.subr.mxu0 0.0
    %1186 = vmatpush1.xpose.msra.mxu0 0.0
    %1187 = vmatprep.subr.mxu0 0.0
    %1188 = vmatpush1.xpose.msra.mxu0 0.0
    %1189 = vmatprep.subr.mxu0 0.0
    %1190 = vmatpush1.xpose.msra.mxu0 0.0
    %1191 = vmatprep.subr.mxu0 0.0
    %1192 = vmatpush1.xpose.msra.mxu0 0.0
    %1193 = vmatprep.subr.mxu0 0.0
    %1194 = vmatpush1.xpose.msra.mxu0 0.0
    %1195 = vmatprep.subr.mxu0 0.0
    %1196 = vmatpush1.xpose.msra.mxu0 0.0
    %1197 = vmatprep.subr.mxu0 0.0
    %1198 = vmatpush1.xpose.msra.mxu0 0.0
    %1199 = vmatprep.subr.mxu0 0.0
    %1200 = vmatpush1.xpose.msra.mxu0 0.0
    %1201 = vmatprep.subr.mxu0 0.0
    %1202 = vmatpush1.xpose.msra.mxu0 0.0
    %1203 = vmatprep.subr.mxu0 0.0
    %1204 = vmatpush1.xpose.msra.mxu0 0.0
    %1205 = vmatprep.subr.mxu0 0.0
    %1206 = vmatpush1.xpose.msra.mxu0 0.0
    %1207 = vmatprep.subr.mxu0 0.0
    %1208 = vmatpush1.xpose.msra.mxu0 0.0
    %1209 = vmatprep.subr.mxu0 0.0
    %1210 = vmatpush1.xpose.msra.mxu0 0.0
    %1211 = vmatprep.subr.mxu0 0.0
    %1212 = vmatpush1.xpose.msra.mxu0 0.0
    %1213 = vmatprep.subr.mxu0 0.0
    %1214 = vmatpush1.xpose.msra.mxu0 0.0
    %1215 = vmatprep.subr.mxu0 0.0
    %1216 = vmatpush1.xpose.msra.mxu0 0.0
    %1217 = vmatprep.subr.mxu0 0.0
    %1218 = vmatpush1.xpose.msra.mxu0 0.0
    %1219 = vmatprep.subr.mxu0 0.0
    %1220 = vmatpush1.xpose.msra.mxu0 0.0
    %1221 = vmatprep.subr.mxu0 0.0
    %1222 = vmatpush1.xpose.msra.mxu0 0.0
    %1223 = vmatprep.subr.mxu0 0.0
    %1224 = vmatpush1.xpose.msra.mxu0 0.0
    %1225 = vmatprep.subr.mxu0 0.0
    %1226 = vmatpush1.xpose.msra.mxu0 0.0
    %1227 = vmatprep.subr.mxu0 0.0
    %1228 = vmatpush1.xpose.msra.mxu0 0.0
    %1229 = vmatprep.mubr.f32.mxu0 %v1156
    %1230 = vmatmul.mubr.f32.gmra.mrb[0].mxu0 %v1155
    %v1231 = vpop.f32.mrb[0].mxu0
    %v1232 = vadd.f32 %v1150, %v1231
    %v1233 = vpop.f32.mrb[0].mxu0
    %1234 = vdwg.mxu0
    %v1235 = vld [vmem:[#allocation8 + $0x10] sm:$0xf0]
    %v1236 = vld [vmem:[#allocation8 + $0x18] sm:$0xf0]
    %s1237 = scalar_lea.vmem [#allocation10], 3
    %v1238 = vld [vmem:[%s1237] ss:$4 sm:$0x3]
    %v1240 = vlaneseq
    %v1241 = vshrl.u32 %v1240, 7
    %v1242 = vsub.s32 0, %v1241
    %v1243 = vrot.slane %v1238, %v1242
    %v1244 = vlaneseq
    %v1245 = vshrl.u32 %v1244, 7
    %v1246 = vsub.s32 1, %v1245
    %v1247 = vrot.slane %v1238, %v1246
    %v1250 = vsub.f32 %v1235, %v1243
    %v1251 = vsub.f32 %v1236, %v1247
    %v1252 = vmul.f32 %v1250, %v1250
    %v1253 = vmul.f32 %v1251, %v1251
    %v1254 = vld [vmem:[%s330 + $0x10] sm:$0xf0]
    %v1255 = vld [vmem:[%s330 + $0x18] sm:$0xf0]
    %s1256 = scalar_lea.vmem %s333, 3 [#allocation10]
    %v1257 = vld [vmem:[%s1256] ss:$4 sm:$0x3]
    %v1259 = vlaneseq
    %v1260 = vshrl.u32 %v1259, 7
    %v1261 = vsub.s32 0, %v1260
    %v1262 = vrot.slane %v1257, %v1261
    %v1263 = vlaneseq
    %v1264 = vshrl.u32 %v1263, 7
    %v1265 = vsub.s32 1, %v1264
    %v1266 = vrot.slane %v1257, %v1265
    %v1269 = vsub.f32 %v1254, %v1262
    %v1270 = vsub.f32 %v1255, %v1266
    %v1271 = vmul.f32 %v1269, %v1269
    %v1272 = vmul.f32 %v1270, %v1270
    %v1273 = vadd.f32 %v1252, %v1271
    %v1274 = vadd.f32 %v1253, %v1272
    %v1275 = vld [vmem:[%s352 + $0x10] sm:$0xf0]
    %v1276 = vld [vmem:[%s352 + $0x18] sm:$0xf0]
    %s1277 = scalar_lea.vmem %s355, 3 [#allocation10]
    %v1278 = vld [vmem:[%s1277] ss:$4 sm:$0x3]
    %v1280 = vlaneseq
    %v1281 = vshrl.u32 %v1280, 7
    %v1282 = vsub.s32 0, %v1281
    %v1283 = vrot.slane %v1278, %v1282
    %v1284 = vlaneseq
    %v1285 = vshrl.u32 %v1284, 7
    %v1286 = vsub.s32 1, %v1285
    %v1287 = vrot.slane %v1278, %v1286
    %v1290 = vsub.f32 %v1275, %v1283
    %v1291 = vsub.f32 %v1276, %v1287
    %v1292 = vmul.f32 %v1290, %v1290
    %v1293 = vmul.f32 %v1291, %v1291
    %v1294 = vadd.f32 %v1273, %v1292
    %v1295 = vadd.f32 %v1274, %v1293
    %v1298 = vrot.slane %v166, 4
    %v1299 = vrot.slane %v167, 4
    %v1304 = vrot.slane %v1294, 4
    %v1305 = vrot.slane %v1295, 4
    %1308 = vmatprep.subr.mxu0 %v1305
    %1309 = vmatpush1.xpose.msra.mxu0 %v1304
    %1310 = vmatprep.subr.mxu0 0.0
    %1311 = vmatpush1.xpose.msra.mxu0 0.0
    %1312 = vmatprep.subr.mxu0 0.0
    %1313 = vmatpush1.xpose.msra.mxu0 0.0
    %1314 = vmatprep.subr.mxu0 0.0
    %1315 = vmatpush1.xpose.msra.mxu0 0.0
    %1316 = vmatprep.subr.mxu0 0.0
    %1317 = vmatpush1.xpose.msra.mxu0 0.0
    %1318 = vmatprep.subr.mxu0 0.0
    %1319 = vmatpush1.xpose.msra.mxu0 0.0
    %1320 = vmatprep.subr.mxu0 0.0
    %1321 = vmatpush1.xpose.msra.mxu0 0.0
    %1322 = vmatprep.subr.mxu0 0.0
    %1323 = vmatpush1.xpose.msra.mxu0 0.0
    %1324 = vmatprep.subr.mxu0 0.0
    %1325 = vmatpush1.xpose.msra.mxu0 0.0
    %1326 = vmatprep.subr.mxu0 0.0
    %1327 = vmatpush1.xpose.msra.mxu0 0.0
    %1328 = vmatprep.subr.mxu0 0.0
    %1329 = vmatpush1.xpose.msra.mxu0 0.0
    %1330 = vmatprep.subr.mxu0 0.0
    %1331 = vmatpush1.xpose.msra.mxu0 0.0
    %1332 = vmatprep.subr.mxu0 0.0
    %1333 = vmatpush1.xpose.msra.mxu0 0.0
    %1334 = vmatprep.subr.mxu0 0.0
    %1335 = vmatpush1.xpose.msra.mxu0 0.0
    %1336 = vmatprep.subr.mxu0 0.0
    %1337 = vmatpush1.xpose.msra.mxu0 0.0
    %1338 = vmatprep.subr.mxu0 0.0
    %1339 = vmatpush1.xpose.msra.mxu0 0.0
    %1340 = vmatprep.subr.mxu0 0.0
    %1341 = vmatpush1.xpose.msra.mxu0 0.0
    %1342 = vmatprep.subr.mxu0 0.0
    %1343 = vmatpush1.xpose.msra.mxu0 0.0
    %1344 = vmatprep.subr.mxu0 0.0
    %1345 = vmatpush1.xpose.msra.mxu0 0.0
    %1346 = vmatprep.subr.mxu0 0.0
    %1347 = vmatpush1.xpose.msra.mxu0 0.0
    %1348 = vmatprep.subr.mxu0 0.0
    %1349 = vmatpush1.xpose.msra.mxu0 0.0
    %1350 = vmatprep.subr.mxu0 0.0
    %1351 = vmatpush1.xpose.msra.mxu0 0.0
    %1352 = vmatprep.subr.mxu0 0.0
    %1353 = vmatpush1.xpose.msra.mxu0 0.0
    %1354 = vmatprep.subr.mxu0 0.0
    %1355 = vmatpush1.xpose.msra.mxu0 0.0
    %1356 = vmatprep.subr.mxu0 0.0
    %1357 = vmatpush1.xpose.msra.mxu0 0.0
    %1358 = vmatprep.subr.mxu0 0.0
    %1359 = vmatpush1.xpose.msra.mxu0 0.0
    %1360 = vmatprep.subr.mxu0 0.0
    %1361 = vmatpush1.xpose.msra.mxu0 0.0
    %1362 = vmatprep.subr.mxu0 0.0
    %1363 = vmatpush1.xpose.msra.mxu0 0.0
    %1364 = vmatprep.subr.mxu0 0.0
    %1365 = vmatpush1.xpose.msra.mxu0 0.0
    %1366 = vmatprep.subr.mxu0 0.0
    %1367 = vmatpush1.xpose.msra.mxu0 0.0
    %1368 = vmatprep.subr.mxu0 0.0
    %1369 = vmatpush1.xpose.msra.mxu0 0.0
    %1370 = vmatprep.subr.mxu0 0.0
    %1371 = vmatpush1.xpose.msra.mxu0 0.0
    %1372 = vmatprep.mubr.f32.mxu0 %v1299
    %1373 = vmatmul.mubr.f32.gmra.mrb[0].mxu0 %v1298
    %v1374 = vpop.f32.mrb[0].mxu0
    %v1375 = vadd.f32 0.0, %v1374
    %v1376 = vpop.f32.mrb[0].mxu0
    %1377 = vdwg.mxu0
    %v1378 = vmul.f32 %v1232, 0.00390625
    %v1379 = vmul.f32 %v1375, 0.1
    %v1380 = vadd.f32 %v1378, %v1379
    %v1381 = vmul.f32 %v171, %v1380
    %v1382 = vsel %vm448, %v1381, 0.0
    %1383 = vadd.xlane.f32.xlu0 %v1382
    %v1384 = vpop.xlane.xlu0 %1383
    %v1385 = vrot.slane %v1384, 4
    %v1386 = vadd.f32 %v1384, %v1385
    %v1387 = vrot.slane %v1386, 2
    %v1388 = vadd.f32 %v1386, %v1387
    %v1389 = vrot.slane %v1388, 1
    %v1390 = vadd.f32 %v1388, %v1389
    %s1391 = vtos %v1390
    %v1392 = vstv %s1391
    %v1393 = vadd.f32 %v1070, %v1392
    %vm1394 = vcmask 0
    %1395 = vst.msk [vmem:[#allocation11] sm:$0x1] %vm1394, %v1393
    // Predicated region
    $region46: #{tpu_custom_call.1} parent=1 // pred_check
      _
    $region47: #{tpu_custom_call.1} parent=1 // pred_check_branch
      %1397 = sbr.rel (0) target = $region49
    $region48: #{tpu_custom_call.1} parent=1 // pred_region
      %s1399 = ssub.s32 16, 16
      %1400 = vsyncadd [#allocation4], %s1399
      %s1402 = sshll.u32 [#allocation11], 4
      %s1403 = int_to_ptr.vmem [resolvable:$true] %s1402
      %1405 = dma.vmem_to_hbm [thread:$0]  %s1403, 16, %s6, [#allocation4]
    $region49: #{tpu_custom_call.1} parent=1 // pred_fallthru
      _
    // Predicated region
    $region50: #{tpu_custom_call.1} parent=1 // pred_check
      _
    $region51: #{tpu_custom_call.1} parent=1 // pred_check_branch
      %1407 = sbr.rel (0) target = $region53
    $region52: #{tpu_custom_call.1} parent=1 // pred_region
      %1408 = dma.done [#allocation4], 16
    $region53: #{tpu_custom_call.1} parent=1 // pred_fallthru
      _
    %1409 = vsyncpa [#allocation3], 1
    %1410 = vsyncpa [#allocation6], 1
    %1411 = vsyncpa [#allocation9], 1
    %1412 = vsyncpa [#allocation4], 1

</llo_original>
